<compile_context>
chip_gen: v6e
topology: v6e:2x2x1
jax: 0.10.0
libtpu: 0.0.40
codegen_flags: <defaults>
</compile_context>

<pallas_src>
import functools

import jax
import jax.numpy as jnp
from jax.experimental import pallas as pl
from jax.experimental.pallas import tpu as pltpu

EPS = 1e-6                       # Norm eps, matches the PyTorch module default
VMEM_LIMIT = 32 * 1024 * 1024    # explicit scoped-VMEM budget (safe on v5e/v6e/v7x)


# ---------------------------------------------------------------------------
# Kernel 1 / 3: per-feature statistics over all batch*seq tokens.
# ---------------------------------------------------------------------------
def _stats_kernel(x_ref, mean_ref, inv_ref, sum_sc, sq_sc, *, n_tokens):
    i = pl.program_id(0)

    @pl.when(i == 0)
    def _():
        sum_sc[...] = jnp.zeros_like(sum_sc)
        sq_sc[...] = jnp.zeros_like(sq_sc)

    xt = x_ref[...].astype(jnp.float32)                       # (tm, D)
    sum_sc[...] += jnp.sum(xt, axis=0, keepdims=True)
    sq_sc[...] += jnp.sum(xt * xt, axis=0, keepdims=True)

    @pl.when(i == pl.num_programs(0) - 1)
    def _():
        n = jnp.float32(n_tokens)
        mean = sum_sc[...] / n
        # unbiased variance (torch.std default, ddof=1)
        var = (sq_sc[...] - n * mean * mean) / (n - 1.0)
        std = jnp.sqrt(jnp.maximum(var, 0.0))
        mean_ref[...] = mean
        inv_ref[...] = 1.0 / (std + EPS)


def _feature_stats(x2d, *, token_tile):
    n, d = x2d.shape
    kernel = functools.partial(_stats_kernel, n_tokens=n)
    mean, inv = pl.pallas_call(
        kernel,
        out_shape=(jax.ShapeDtypeStruct((1, d), jnp.float32),
                   jax.ShapeDtypeStruct((1, d), jnp.float32)),
        grid=(n // token_tile,),
        in_specs=[pl.BlockSpec((token_tile, d), lambda i: (i, 0))],
        out_specs=(pl.BlockSpec((1, d), lambda i: (0, 0)),
                   pl.BlockSpec((1, d), lambda i: (0, 0))),
        scratch_shapes=[pltpu.VMEM((1, d), jnp.float32),
                        pltpu.VMEM((1, d), jnp.float32)],
        compiler_params=pltpu.CompilerParams(
            dimension_semantics=("arbitrary",),
            vmem_limit_bytes=VMEM_LIMIT),
    )(x2d)
    return mean, inv


# ---------------------------------------------------------------------------
# Kernel 2: norm_1 + single-head self-attention + residual (grid over batch).
# ---------------------------------------------------------------------------
def _attn_kernel(x_ref, mean_ref, inv_ref, a_ref, b_ref,
                 wqkv_ref, bqkv_ref, wo_ref, bo_ref, x1_ref):
    cdt = wqkv_ref.dtype                                     # matmul compute dtype
    x = x_ref[...].astype(jnp.float32)                       # (S, D)
    d = x.shape[1]

    # norm_1 (per-feature stats precomputed in pass 1)
    xn = a_ref[...] * (x - mean_ref[...]) * inv_ref[...] + b_ref[...]

    # fused q|k|v projection: one wide (S, D) @ (D, 3D) MXU pass
    qkv = jnp.dot(xn.astype(cdt), wqkv_ref[...],
                  preferred_element_type=jnp.float32) + bqkv_ref[...]
    q = qkv[:, :d] * (d ** -0.5)          # fold 1/sqrt(D) into q (O(S*D) muls)
    k = qkv[:, d:2 * d]
    v = qkv[:, 2 * d:]

    s = jnp.dot(q.astype(cdt), k.astype(cdt).T,
                preferred_element_type=jnp.float32)          # (S, S)
    m = jnp.max(s, axis=-1, keepdims=True)
    p = jnp.exp(s - m)
    denom = jnp.sum(p, axis=-1, keepdims=True)
    ctx = jnp.dot(p.astype(cdt), v.astype(cdt),
                  preferred_element_type=jnp.float32)
    # reciprocal routes to the EUP slot; exact (approx=False) keeps f32 numerics
    ctx = ctx * pl.reciprocal(denom, approx=False)
    attn = jnp.dot(ctx.astype(cdt), wo_ref[...],
                   preferred_element_type=jnp.float32) + bo_ref[...]

    # residual (dropout_1 is identity at inference)
    x1_ref[...] = (x + attn).astype(x1_ref.dtype)


# ---------------------------------------------------------------------------
# Kernel 4: norm_2 + feed-forward + residual (token-tiled grid).
# ---------------------------------------------------------------------------
def _ffn_kernel(x1_ref, mean_ref, inv_ref, a_ref, b_ref,
                w1_ref, b1_ref, w2_ref, b2_ref, out_ref):
    cdt = w1_ref.dtype
    x1 = x1_ref[...].astype(jnp.float32)                     # (tm, D)
    xn = a_ref[...] * (x1 - mean_ref[...]) * inv_ref[...] + b_ref[...]
    h = jnp.dot(xn.astype(cdt), w1_ref[...],
                preferred_element_type=jnp.float32) + b1_ref[...]
    h = jnp.maximum(h, 0.0)
    ff = jnp.dot(h.astype(cdt), w2_ref[...],
                 preferred_element_type=jnp.float32) + b2_ref[...]
    # residual (dropout_2 is identity at inference)
    out_ref[...] = (x1 + ff).astype(out_ref.dtype)


# ---------------------------------------------------------------------------
# Wrapper
# ---------------------------------------------------------------------------
def _pick_token_tile(n_tokens, requested=None, max_tile=512):
    if requested is not None and n_tokens % requested == 0 and (
            requested == n_tokens or requested % 8 == 0):
        return requested
    if n_tokens <= max_tile:
        return n_tokens
    t = max_tile - (max_tile % 8)
    while t >= 8:
        if n_tokens % t == 0:
            return t
        t -= 8
    return n_tokens


def _resident(arr):
    """Full-array BlockSpec with a constant index_map -> stays resident in VMEM."""
    nd = arr.ndim
    return pl.BlockSpec(arr.shape, lambda *_: (0,) * nd)


def encoder_layer(x, params, *, token_tile=None, compute_dtype=jnp.float32):
    """x: (B, S, D) float32.  params: tuple of 16 arrays (see make_params).

    compute_dtype=jnp.bfloat16 enables bf16 MXU matmuls (f32 accumulation,
    norm/softmax/residuals stay f32); default f32 matches reference numerics.
    """
    (a1, b1, a2, b2, wq, bq, wk, bk, wv, bv, wo, bo, w1, bf1, w2, bf2) = params
    B, S, D = x.shape
    d_ff = w1.shape[1]
    N = B * S
    tm = _pick_token_tile(N, token_tile)

    # Fuse q|k|v weights once on the host side -> one wide MXU pass in-kernel.
    wqkv = jnp.concatenate([wq, wk, wv], axis=1).astype(compute_dtype)   # (D, 3D)
    bqkv = jnp.concatenate([bq, bk, bv], axis=1).astype(jnp.float32)     # (1, 3D)
    wo_c = wo.astype(compute_dtype)
    w1_c = w1.astype(compute_dtype)
    w2_c = w2.astype(compute_dtype)

    x2d = x.reshape(N, D)

    par = pltpu.CompilerParams(dimension_semantics=("parallel",),
                               vmem_limit_bytes=VMEM_LIMIT)

    # ---- pass 1: norm_1 statistics (per feature, over batch*seq) ----
    mean1, inv1 = _feature_stats(x2d, token_tile=tm)

    # ---- pass 2: norm_1 + self-attention + residual, batch-parallel ----
    itemsize = jnp.dtype(compute_dtype).itemsize
    attn_cost = pl.CostEstimate(
        flops=2 * B * (S * D * 3 * D + 2 * S * S * D + S * D * D),
        transcendentals=B * S * S,
        bytes_accessed=8 * B * S * D + (wqkv.size + wo_c.size) * itemsize)
    x1 = pl.pallas_call(
        _attn_kernel,
        out_shape=jax.ShapeDtypeStruct((B, S, D), x.dtype),
        grid=(B,),
        in_specs=[
            pl.BlockSpec((None, S, D), lambda bi: (bi, 0, 0)),
            _resident(mean1), _resident(inv1), _resident(a1), _resident(b1),
            _resident(wqkv), _resident(bqkv), _resident(wo_c), _resident(bo),
        ],
        out_specs=pl.BlockSpec((None, S, D), lambda bi: (bi, 0, 0)),
        compiler_params=par,
        cost_estimate=attn_cost,
    )(x, mean1, inv1, a1, b1, wqkv, bqkv, wo_c, bo)

    x1_2d = x1.reshape(N, D)

    # ---- pass 3: norm_2 statistics over x1 ----
    mean2, inv2 = _feature_stats(x1_2d, token_tile=tm)

    # ---- pass 4: norm_2 + feed-forward + residual, token-tiled ----
    ffn_cost = pl.CostEstimate(
        flops=4 * N * D * d_ff,
        transcendentals=0,
        bytes_accessed=8 * N * D + (w1_c.size + w2_c.size) * itemsize)
    out2d = pl.pallas_call(
        _ffn_kernel,
        out_shape=jax.ShapeDtypeStruct((N, D), x.dtype),
        grid=(N // tm,),
        in_specs=[
            pl.BlockSpec((tm, D), lambda i: (i, 0)),
            _resident(mean2), _resident(inv2), _resident(a2), _resident(b2),
            _resident(w1_c), _resident(bf1), _resident(w2_c), _resident(bf2),
        ],
        out_specs=pl.BlockSpec((tm, D), lambda i: (i, 0)),
        compiler_params=par,
        cost_estimate=ffn_cost,
    )(x1_2d, mean2, inv2, a2, b2, w1_c, bf1, w2_c, bf2)

    return out2d.reshape(B, S, D)


# ---------------------------------------------------------------------------
# Parameters & pure-JAX reference (mirror of the PyTorch forward, inference)
# ---------------------------------------------------------------------------
def make_params(key, d_model, d_ff):
    ks = jax.random.split(key, 12)
    scale = 0.1
    a1 = jnp.ones((1, d_model), jnp.float32)
    b1 = jnp.zeros((1, d_model), jnp.float32)
    a2 = jnp.ones((1, d_model), jnp.float32)
    b2 = jnp.zeros((1, d_model), jnp.float32)
    wq = scale * jax.random.normal(ks[0], (d_model, d_model), jnp.float32)
    bq = scale * jax.random.normal(ks[1], (1, d_model), jnp.float32)
    wk = scale * jax.random.normal(ks[2], (d_model, d_model), jnp.float32)
    bk = scale * jax.random.normal(ks[3], (1, d_model), jnp.float32)
    wv = scale * jax.random.normal(ks[4], (d_model, d_model), jnp.float32)
    bv = scale * jax.random.normal(ks[5], (1, d_model), jnp.float32)
    wo = scale * jax.random.normal(ks[6], (d_model, d_model), jnp.float32)
    bo = scale * jax.random.normal(ks[7], (1, d_model), jnp.float32)
    w1 = scale * jax.random.normal(ks[8], (d_model, d_ff), jnp.float32)
    bf1 = scale * jax.random.normal(ks[9], (1, d_ff), jnp.float32)
    w2 = scale * jax.random.normal(ks[10], (d_ff, d_model), jnp.float32)
    bf2 = scale * jax.random.normal(ks[11], (1, d_model), jnp.float32)
    return (a1, b1, a2, b2, wq, bq, wk, bk, wv, bv, wo, bo, w1, bf1, w2, bf2)


def reference(x, params):
    (a1, b1, a2, b2, wq, bq, wk, bk, wv, bv, wo, bo, w1, bf1, w2, bf2) = params
    B, S, D = x.shape
    n = B * S

    def norm(y, alpha, bias):
        mean = jnp.mean(y, axis=(0, 1), keepdims=True)
        std = jnp.sqrt(jnp.sum((y - mean) ** 2, axis=(0, 1), keepdims=True) / (n - 1))
        return alpha * (y - mean) / (std + EPS) + bias

    xn1 = norm(x, a1, b1)
    q = xn1 @ wq + bq
    k = xn1 @ wk + bk
    v = xn1 @ wv + bv
    scores = jnp.einsum('bqd,bkd->bqk', q, k) / jnp.sqrt(jnp.float32(D))
    p = jax.nn.softmax(scores, axis=-1)
    attn = jnp.einsum('bqk,bkd->bqd', p, v) @ wo + bo
    x1 = x + attn
    xn2 = norm(x1, a2, b2)
    ff = jnp.maximum(xn2 @ w1 + bf1, 0.0) @ w2 + bf2
    return x1 + ff


if __name__ == "__main__":
    B, S, D, D_FF = 2, 64, 32, 64
    key = jax.random.PRNGKey(0)
    kx, kp = jax.random.split(key)
    x = jax.random.normal(kx, (B, S, D), jnp.float32)
    params = make_params(kp, D, D_FF)

    # token_tile=64 -> two token tiles, so the stats / FFN grids actually
    # exercise the pipelined multi-tile path; attention grid is over batch.
    run = jax.jit(functools.partial(encoder_layer, token_tile=64))
    out = jax.block_until_ready(run(x, params))

    ref = reference(x, params)
    assert out.shape == (B, S, D)
    err = float(jnp.max(jnp.abs(out - ref)))
    assert jnp.allclose(out, ref, atol=5e-4, rtol=5e-4), f"max abs err {err}"
    print("KERNEL_OK")
</pallas_src>

<mosaic_0001>
module attributes {stable_mosaic.version = 11 : i64} {
  func.func @_stats_kernel(%arg0: i32, %arg1: memref<64x32xf32, #tpu.memory_space<vmem>>, %arg2: memref<1x32xf32, #tpu.memory_space<vmem>>, %arg3: memref<1x32xf32, #tpu.memory_space<vmem>>, %arg4: memref<1x32xf32, #tpu.memory_space<vmem>>, %arg5: memref<1x32xf32, #tpu.memory_space<vmem>>) attributes {dimension_semantics = [#tpu.dimension_semantics<arbitrary>], iteration_bounds = array<i64: 2>, scalar_prefetch = 0 : i64, scratch_operands = 2 : i64, tpu.core_type = #tpu.core_type<tc>, window_params = [{transform_indices = @transform_0, window_bounds = array<i64: 64, 32>}, {pipeline_mode = #tpu.pipeline_mode<synchronous>, transform_indices = @transform_1, window_bounds = array<i64: 1, 32>}, {pipeline_mode = #tpu.pipeline_mode<synchronous>, transform_indices = @transform_2, window_bounds = array<i64: 1, 32>}]} {
    %c0_i32 = arith.constant 0 : i32
    %0 = arith.cmpi eq, %arg0, %c0_i32 : i32
    %1 = arith.extui %0 : i1 to i32
    %c0_i32_0 = arith.constant 0 : i32
    %2 = arith.cmpi ne, %1, %c0_i32_0 : i32
    scf.if %2 {
      %cst_12 = arith.constant 0.000000e+00 : f32
      %18 = vector.broadcast %cst_12 : f32 to vector<1x32xf32>
      %c0_13 = arith.constant 0 : index
      %c0_14 = arith.constant 0 : index
      %19 = vector.load %arg4[%c0_13, %c0_14] : memref<1x32xf32, #tpu.memory_space<vmem>>, vector<1x32xf32>
      tpu.vector_store %arg4[%c0_13, %c0_14], %18 {strides = array<i32>} : memref<1x32xf32, #tpu.memory_space<vmem>>, vector<1x32xf32>,
      %cst_15 = arith.constant 0.000000e+00 : f32
      %20 = vector.broadcast %cst_15 : f32 to vector<1x32xf32>
      %c0_16 = arith.constant 0 : index
      %c0_17 = arith.constant 0 : index
      %21 = vector.load %arg5[%c0_16, %c0_17] : memref<1x32xf32, #tpu.memory_space<vmem>>, vector<1x32xf32>
      tpu.vector_store %arg5[%c0_16, %c0_17], %20 {strides = array<i32>} : memref<1x32xf32, #tpu.memory_space<vmem>>, vector<1x32xf32>,
    } else {
    }
    %c0 = arith.constant 0 : index
    %c0_1 = arith.constant 0 : index
    %3 = vector.load %arg1[%c0, %c0_1] : memref<64x32xf32, #tpu.memory_space<vmem>>, vector<64x32xf32>
    %c0_2 = arith.constant 0 : index
    %c0_3 = arith.constant 0 : index
    %4 = vector.load %arg4[%c0_2, %c0_3] : memref<1x32xf32, #tpu.memory_space<vmem>>, vector<1x32xf32>
    %cst = arith.constant dense<0.000000e+00> : vector<32xf32>
    %5 = vector.multi_reduction <add>, %3, %cst [0] : vector<64x32xf32> to vector<32xf32>
    %6 = vector.shape_cast %5 : vector<32xf32> to vector<1x32xf32>
    %7 = arith.addf %4, %6 : vector<1x32xf32>
    %c0_4 = arith.constant 0 : index
    %c0_5 = arith.constant 0 : index
    %8 = vector.load %arg4[%c0_4, %c0_5] : memref<1x32xf32, #tpu.memory_space<vmem>>, vector<1x32xf32>
    tpu.vector_store %arg4[%c0_4, %c0_5], %7 {strides = array<i32>} : memref<1x32xf32, #tpu.memory_space<vmem>>, vector<1x32xf32>,
    %c0_6 = arith.constant 0 : index
    %c0_7 = arith.constant 0 : index
    %9 = vector.load %arg5[%c0_6, %c0_7] : memref<1x32xf32, #tpu.memory_space<vmem>>, vector<1x32xf32>
    %10 = arith.mulf %3, %3 : vector<64x32xf32>
    %cst_8 = arith.constant dense<0.000000e+00> : vector<32xf32>
    %11 = vector.multi_reduction <add>, %10, %cst_8 [0] : vector<64x32xf32> to vector<32xf32>
    %12 = vector.shape_cast %11 : vector<32xf32> to vector<1x32xf32>
    %13 = arith.addf %9, %12 : vector<1x32xf32>
    %c0_9 = arith.constant 0 : index
    %c0_10 = arith.constant 0 : index
    %14 = vector.load %arg5[%c0_9, %c0_10] : memref<1x32xf32, #tpu.memory_space<vmem>>, vector<1x32xf32>
    tpu.vector_store %arg5[%c0_9, %c0_10], %13 {strides = array<i32>} : memref<1x32xf32, #tpu.memory_space<vmem>>, vector<1x32xf32>,
    %c1_i32 = arith.constant 1 : i32
    %15 = arith.cmpi eq, %arg0, %c1_i32 : i32
    %16 = arith.extui %15 : i1 to i32
    %c0_i32_11 = arith.constant 0 : i32
    %17 = arith.cmpi ne, %16, %c0_i32_11 : i32
    scf.if %17 {
      %c0_12 = arith.constant 0 : index
      %c0_13 = arith.constant 0 : index
      %18 = vector.load %arg4[%c0_12, %c0_13] : memref<1x32xf32, #tpu.memory_space<vmem>>, vector<1x32xf32>
      %cst_14 = arith.constant 1.280000e+02 : f32
      %19 = vector.broadcast %cst_14 : f32 to vector<1x32xf32>
      %20 = arith.divf %18, %19 : vector<1x32xf32>
      %c0_15 = arith.constant 0 : index
      %c0_16 = arith.constant 0 : index
      %21 = vector.load %arg5[%c0_15, %c0_16] : memref<1x32xf32, #tpu.memory_space<vmem>>, vector<1x32xf32>
      %cst_17 = arith.constant 1.280000e+02 : f32
      %22 = vector.broadcast %cst_17 : f32 to vector<1x32xf32>
      %23 = arith.mulf %22, %20 : vector<1x32xf32>
      %24 = arith.mulf %23, %20 : vector<1x32xf32>
      %25 = arith.subf %21, %24 : vector<1x32xf32>
      %cst_18 = arith.constant 1.280000e+02 : f32
      %cst_19 = arith.constant 1.000000e+00 : f32
      %26 = arith.subf %cst_18, %cst_19 : f32
      %27 = vector.broadcast %26 : f32 to vector<1x32xf32>
      %28 = arith.divf %25, %27 : vector<1x32xf32>
      %cst_20 = arith.constant 0.000000e+00 : f32
      %29 = vector.broadcast %cst_20 : f32 to vector<1x32xf32>
      %30 = arith.maximumf %28, %29 : vector<1x32xf32>
      %31 = math.sqrt %30 : vector<1x32xf32>
      %c0_21 = arith.constant 0 : index
      %c0_22 = arith.constant 0 : index
      %32 = vector.load %arg2[%c0_21, %c0_22] : memref<1x32xf32, #tpu.memory_space<vmem>>, vector<1x32xf32>
      tpu.vector_store %arg2[%c0_21, %c0_22], %20 {strides = array<i32>} : memref<1x32xf32, #tpu.memory_space<vmem>>, vector<1x32xf32>,
      %cst_23 = arith.constant 9.99999997E-7 : f32
      %33 = vector.broadcast %cst_23 : f32 to vector<1x32xf32>
      %34 = arith.addf %31, %33 : vector<1x32xf32>
      %cst_24 = arith.constant 1.000000e+00 : f32
      %35 = vector.broadcast %cst_24 : f32 to vector<1x32xf32>
      %36 = arith.divf %35, %34 : vector<1x32xf32>
      %c0_25 = arith.constant 0 : index
      %c0_26 = arith.constant 0 : index
      %37 = vector.load %arg3[%c0_25, %c0_26] : memref<1x32xf32, #tpu.memory_space<vmem>>, vector<1x32xf32>
      tpu.vector_store %arg3[%c0_25, %c0_26], %36 {strides = array<i32>} : memref<1x32xf32, #tpu.memory_space<vmem>>, vector<1x32xf32>,
    } else {
    }
    return
  }
  func.func @transform_0(%arg0: i32) -> (i32, i32) {
    %c0_i32 = arith.constant 0 : i32
    %c0_i32_0 = arith.constant 0 : i32
    return %arg0, %c0_i32 : i32, i32
  }
  func.func @transform_1(%arg0: i32) -> (i32, i32) {
    %c0_i32 = arith.constant 0 : i32
    %c0_i32_0 = arith.constant 0 : i32
    %c0_i32_1 = arith.constant 0 : i32
    return %c0_i32, %c0_i32_0 : i32, i32
  }
  func.func @transform_2(%arg0: i32) -> (i32, i32) {
    %c0_i32 = arith.constant 0 : i32
    %c0_i32_0 = arith.constant 0 : i32
    %c0_i32_1 = arith.constant 0 : i32
    return %c0_i32, %c0_i32_0 : i32, i32
  }
}

module attributes {stable_mosaic.version = 11 : i64} {
  func.func @_attn_kernel(%arg0: i32, %arg1: memref<1x64x32xf32, #tpu.memory_space<vmem>>, %arg2: memref<1x32xf32, #tpu.memory_space<vmem>>, %arg3: memref<1x32xf32, #tpu.memory_space<vmem>>, %arg4: memref<1x32xf32, #tpu.memory_space<vmem>>, %arg5: memref<1x32xf32, #tpu.memory_space<vmem>>, %arg6: memref<32x96xf32, #tpu.memory_space<vmem>>, %arg7: memref<1x96xf32, #tpu.memory_space<vmem>>, %arg8: memref<32x32xf32, #tpu.memory_space<vmem>>, %arg9: memref<1x32xf32, #tpu.memory_space<vmem>>, %arg10: memref<1x64x32xf32, #tpu.memory_space<vmem>>) attributes {dimension_semantics = [#tpu.dimension_semantics<parallel>], iteration_bounds = array<i64: 2>, scalar_prefetch = 0 : i64, scratch_operands = 0 : i64, tpu.core_type = #tpu.core_type<tc>, window_params = [{transform_indices = @transform_0, window_bounds = array<i64: 1, 64, 32>}, {pipeline_mode = #tpu.pipeline_mode<synchronous>, transform_indices = @transform_1, window_bounds = array<i64: 1, 32>}, {pipeline_mode = #tpu.pipeline_mode<synchronous>, transform_indices = @transform_2, window_bounds = array<i64: 1, 32>}, {pipeline_mode = #tpu.pipeline_mode<synchronous>, transform_indices = @transform_3, window_bounds = array<i64: 1, 32>}, {pipeline_mode = #tpu.pipeline_mode<synchronous>, transform_indices = @transform_4, window_bounds = array<i64: 1, 32>}, {pipeline_mode = #tpu.pipeline_mode<synchronous>, transform_indices = @transform_5, window_bounds = array<i64: 32, 96>}, {pipeline_mode = #tpu.pipeline_mode<synchronous>, transform_indices = @transform_6, window_bounds = array<i64: 1, 96>}, {pipeline_mode = #tpu.pipeline_mode<synchronous>, transform_indices = @transform_7, window_bounds = array<i64: 32, 32>}, {pipeline_mode = #tpu.pipeline_mode<synchronous>, transform_indices = @transform_8, window_bounds = array<i64: 1, 32>}, {transform_indices = @transform_9, window_bounds = array<i64: 1, 64, 32>}]} {
    %c0 = arith.constant 0 : index
    %c0_0 = arith.constant 0 : index
    %c0_1 = arith.constant 0 : index
    %0 = vector.load %arg1[%c0, %c0_0, %c0_1] : memref<1x64x32xf32, #tpu.memory_space<vmem>>, vector<1x64x32xf32>
    %1 = vector.shape_cast %0 : vector<1x64x32xf32> to vector<64x32xf32>
    %c0_2 = arith.constant 0 : index
    %c0_3 = arith.constant 0 : index
    %2 = vector.load %arg4[%c0_2, %c0_3] : memref<1x32xf32, #tpu.memory_space<vmem>>, vector<1x32xf32>
    %c0_4 = arith.constant 0 : index
    %c0_5 = arith.constant 0 : index
    %3 = vector.load %arg2[%c0_4, %c0_5] : memref<1x32xf32, #tpu.memory_space<vmem>>, vector<1x32xf32>
    %4 = vector.broadcast %3 : vector<1x32xf32> to vector<64x32xf32>
    %5 = arith.subf %1, %4 : vector<64x32xf32>
    %6 = vector.broadcast %2 : vector<1x32xf32> to vector<64x32xf32>
    %7 = arith.mulf %6, %5 : vector<64x32xf32>
    %c0_6 = arith.constant 0 : index
    %c0_7 = arith.constant 0 : index
    %8 = vector.load %arg3[%c0_6, %c0_7] : memref<1x32xf32, #tpu.memory_space<vmem>>, vector<1x32xf32>
    %9 = vector.broadcast %8 : vector<1x32xf32> to vector<64x32xf32>
    %10 = arith.mulf %7, %9 : vector<64x32xf32>
    %c0_8 = arith.constant 0 : index
    %c0_9 = arith.constant 0 : index
    %11 = vector.load %arg5[%c0_8, %c0_9] : memref<1x32xf32, #tpu.memory_space<vmem>>, vector<1x32xf32>
    %12 = vector.broadcast %11 : vector<1x32xf32> to vector<64x32xf32>
    %13 = arith.addf %10, %12 : vector<64x32xf32>
    %c0_10 = arith.constant 0 : index
    %c0_11 = arith.constant 0 : index
    %14 = vector.load %arg6[%c0_10, %c0_11] : memref<32x96xf32, #tpu.memory_space<vmem>>, vector<32x96xf32>
    %cst = arith.constant dense<0.000000e+00> : vector<64x96xf32>
    %15 = tpu.matmul %13, %14, %cst {dimension_numbers = #tpu.dot_dimension_numbers<[1], [0], [0], [1], [0, 0, 1, 1], [], []>} : vector<64x32xf32>, vector<32x96xf32>, vector<64x96xf32> -> vector<64x96xf32>
    %c0_12 = arith.constant 0 : index
    %c0_13 = arith.constant 0 : index
    %16 = vector.load %arg7[%c0_12, %c0_13] : memref<1x96xf32, #tpu.memory_space<vmem>>, vector<1x96xf32>
    %17 = vector.broadcast %16 : vector<1x96xf32> to vector<64x96xf32>
    %18 = arith.addf %15, %17 : vector<64x96xf32>
    %19 = vector.extract_strided_slice %18 {offsets = [0, 0], sizes = [64, 32], strides = [1, 1]} : vector<64x96xf32> to vector<64x32xf32>
    %cst_14 = arith.constant 0.176776692 : f32
    %20 = vector.broadcast %cst_14 : f32 to vector<64x32xf32>
    %21 = arith.mulf %19, %20 : vector<64x32xf32>
    %22 = vector.extract_strided_slice %18 {offsets = [0, 32], sizes = [64, 32], strides = [1, 1]} : vector<64x96xf32> to vector<64x32xf32>
    %23 = vector.extract_strided_slice %18 {offsets = [0, 64], sizes = [64, 32], strides = [1, 1]} : vector<64x96xf32> to vector<64x32xf32>
    %24 = tpu.transpose %22, [1, 0] : vector<64x32xf32> -> vector<32x64xf32>
    %cst_15 = arith.constant dense<0.000000e+00> : vector<64x64xf32>
    %25 = tpu.matmul %21, %24, %cst_15 {dimension_numbers = #tpu.dot_dimension_numbers<[1], [0], [0], [1], [0, 0, 1, 1], [], []>} : vector<64x32xf32>, vector<32x64xf32>, vector<64x64xf32> -> vector<64x64xf32>
    %cst_16 = arith.constant dense<0xFF800000> : vector<64xf32>
    %26 = vector.multi_reduction <maximumf>, %25, %cst_16 [1] : vector<64x64xf32> to vector<64xf32>
    %27 = vector.shape_cast %26 : vector<64xf32> to vector<64x1xf32>
    %28 = vector.broadcast %27 : vector<64x1xf32> to vector<64x64xf32>
    %29 = arith.subf %25, %28 : vector<64x64xf32>
    %30 = math.exp %29 : vector<64x64xf32>
    %cst_17 = arith.constant dense<0.000000e+00> : vector<64xf32>
    %31 = vector.multi_reduction <add>, %30, %cst_17 [1] : vector<64x64xf32> to vector<64xf32>
    %32 = vector.shape_cast %31 : vector<64xf32> to vector<64x1xf32>
    %cst_18 = arith.constant dense<0.000000e+00> : vector<64x32xf32>
    %33 = tpu.matmul %30, %23, %cst_18 {dimension_numbers = #tpu.dot_dimension_numbers<[1], [0], [0], [1], [0, 0, 1, 1], [], []>} : vector<64x64xf32>, vector<64x32xf32>, vector<64x32xf32> -> vector<64x32xf32>
    %34 = tpu.reciprocal %32 : vector<64x1xf32> -> vector<64x1xf32>
    %35 = vector.broadcast %34 : vector<64x1xf32> to vector<64x32xf32>
    %36 = arith.mulf %33, %35 : vector<64x32xf32>
    %c0_19 = arith.constant 0 : index
    %c0_20 = arith.constant 0 : index
    %37 = vector.load %arg8[%c0_19, %c0_20] : memref<32x32xf32, #tpu.memory_space<vmem>>, vector<32x32xf32>
    %cst_21 = arith.constant dense<0.000000e+00> : vector<64x32xf32>
    %38 = tpu.matmul %36, %37, %cst_21 {dimension_numbers = #tpu.dot_dimension_numbers<[1], [0], [0], [1], [0, 0, 1, 1], [], []>} : vector<64x32xf32>, vector<32x32xf32>, vector<64x32xf32> -> vector<64x32xf32>
    %c0_22 = arith.constant 0 : index
    %c0_23 = arith.constant 0 : index
    %39 = vector.load %arg9[%c0_22, %c0_23] : memref<1x32xf32, #tpu.memory_space<vmem>>, vector<1x32xf32>
    %40 = vector.broadcast %39 : vector<1x32xf32> to vector<64x32xf32>
    %41 = arith.addf %38, %40 : vector<64x32xf32>
    %42 = arith.addf %1, %41 : vector<64x32xf32>
    %c0_24 = arith.constant 0 : index
    %c0_25 = arith.constant 0 : index
    %c0_26 = arith.constant 0 : index
    %43 = vector.load %arg10[%c0_24, %c0_25, %c0_26] : memref<1x64x32xf32, #tpu.memory_space<vmem>>, vector<1x64x32xf32>
    %44 = vector.shape_cast %43 : vector<1x64x32xf32> to vector<64x32xf32>
    %45 = vector.shape_cast %42 : vector<64x32xf32> to vector<1x64x32xf32>
    tpu.vector_store %arg10[%c0_24, %c0_25, %c0_26], %45 {strides = array<i32>} : memref<1x64x32xf32, #tpu.memory_space<vmem>>, vector<1x64x32xf32>,
    return
  }
  func.func @transform_0(%arg0: i32) -> (i32, i32, i32) {
    %c0_i32 = arith.constant 0 : i32
    %c0_i32_0 = arith.constant 0 : i32
    %c0_i32_1 = arith.constant 0 : i32
    return %arg0, %c0_i32, %c0_i32_0 : i32, i32, i32
  }
  func.func @transform_1(%arg0: i32) -> (i32, i32) {
    %c0_i32 = arith.constant 0 : i32
    %c0_i32_0 = arith.constant 0 : i32
    %c0_i32_1 = arith.constant 0 : i32
    return %c0_i32, %c0_i32_0 : i32, i32
  }
  func.func @transform_2(%arg0: i32) -> (i32, i32) {
    %c0_i32 = arith.constant 0 : i32
    %c0_i32_0 = arith.constant 0 : i32
    %c0_i32_1 = arith.constant 0 : i32
    return %c0_i32, %c0_i32_0 : i32, i32
  }
  func.func @transform_3(%arg0: i32) -> (i32, i32) {
    %c0_i32 = arith.constant 0 : i32
    %c0_i32_0 = arith.constant 0 : i32
    %c0_i32_1 = arith.constant 0 : i32
    return %c0_i32, %c0_i32_0 : i32, i32
  }
  func.func @transform_4(%arg0: i32) -> (i32, i32) {
    %c0_i32 = arith.constant 0 : i32
    %c0_i32_0 = arith.constant 0 : i32
    %c0_i32_1 = arith.constant 0 : i32
    return %c0_i32, %c0_i32_0 : i32, i32
  }
  func.func @transform_5(%arg0: i32) -> (i32, i32) {
    %c0_i32 = arith.constant 0 : i32
    %c0_i32_0 = arith.constant 0 : i32
    %c0_i32_1 = arith.constant 0 : i32
    return %c0_i32, %c0_i32_0 : i32, i32
  }
  func.func @transform_6(%arg0: i32) -> (i32, i32) {
    %c0_i32 = arith.constant 0 : i32
    %c0_i32_0 = arith.constant 0 : i32
    %c0_i32_1 = arith.constant 0 : i32
    return %c0_i32, %c0_i32_0 : i32, i32
  }
  func.func @transform_7(%arg0: i32) -> (i32, i32) {
    %c0_i32 = arith.constant 0 : i32
    %c0_i32_0 = arith.constant 0 : i32
    %c0_i32_1 = arith.constant 0 : i32
    return %c0_i32, %c0_i32_0 : i32, i32
  }
  func.func @transform_8(%arg0: i32) -> (i32, i32) {
    %c0_i32 = arith.constant 0 : i32
    %c0_i32_0 = arith.constant 0 : i32
    %c0_i32_1 = arith.constant 0 : i32
    return %c0_i32, %c0_i32_0 : i32, i32
  }
  func.func @transform_9(%arg0: i32) -> (i32, i32, i32) {
    %c0_i32 = arith.constant 0 : i32
    %c0_i32_0 = arith.constant 0 : i32
    %c0_i32_1 = arith.constant 0 : i32
    return %arg0, %c0_i32, %c0_i32_0 : i32, i32, i32
  }
}

module attributes {stable_mosaic.version = 11 : i64} {
  func.func @_ffn_kernel(%arg0: i32, %arg1: memref<64x32xf32, #tpu.memory_space<vmem>>, %arg2: memref<1x32xf32, #tpu.memory_space<vmem>>, %arg3: memref<1x32xf32, #tpu.memory_space<vmem>>, %arg4: memref<1x32xf32, #tpu.memory_space<vmem>>, %arg5: memref<1x32xf32, #tpu.memory_space<vmem>>, %arg6: memref<32x64xf32, #tpu.memory_space<vmem>>, %arg7: memref<1x64xf32, #tpu.memory_space<vmem>>, %arg8: memref<64x32xf32, #tpu.memory_space<vmem>>, %arg9: memref<1x32xf32, #tpu.memory_space<vmem>>, %arg10: memref<64x32xf32, #tpu.memory_space<vmem>>) attributes {dimension_semantics = [#tpu.dimension_semantics<parallel>], iteration_bounds = array<i64: 2>, scalar_prefetch = 0 : i64, scratch_operands = 0 : i64, tpu.core_type = #tpu.core_type<tc>, window_params = [{transform_indices = @transform_0, window_bounds = array<i64: 64, 32>}, {pipeline_mode = #tpu.pipeline_mode<synchronous>, transform_indices = @transform_1, window_bounds = array<i64: 1, 32>}, {pipeline_mode = #tpu.pipeline_mode<synchronous>, transform_indices = @transform_2, window_bounds = array<i64: 1, 32>}, {pipeline_mode = #tpu.pipeline_mode<synchronous>, transform_indices = @transform_3, window_bounds = array<i64: 1, 32>}, {pipeline_mode = #tpu.pipeline_mode<synchronous>, transform_indices = @transform_4, window_bounds = array<i64: 1, 32>}, {pipeline_mode = #tpu.pipeline_mode<synchronous>, transform_indices = @transform_5, window_bounds = array<i64: 32, 64>}, {pipeline_mode = #tpu.pipeline_mode<synchronous>, transform_indices = @transform_6, window_bounds = array<i64: 1, 64>}, {pipeline_mode = #tpu.pipeline_mode<synchronous>, transform_indices = @transform_7, window_bounds = array<i64: 64, 32>}, {pipeline_mode = #tpu.pipeline_mode<synchronous>, transform_indices = @transform_8, window_bounds = array<i64: 1, 32>}, {transform_indices = @transform_9, window_bounds = array<i64: 64, 32>}]} {
    %c0 = arith.constant 0 : index
    %c0_0 = arith.constant 0 : index
    %0 = vector.load %arg1[%c0, %c0_0] : memref<64x32xf32, #tpu.memory_space<vmem>>, vector<64x32xf32>
    %c0_1 = arith.constant 0 : index
    %c0_2 = arith.constant 0 : index
    %1 = vector.load %arg4[%c0_1, %c0_2] : memref<1x32xf32, #tpu.memory_space<vmem>>, vector<1x32xf32>
    %c0_3 = arith.constant 0 : index
    %c0_4 = arith.constant 0 : index
    %2 = vector.load %arg2[%c0_3, %c0_4] : memref<1x32xf32, #tpu.memory_space<vmem>>, vector<1x32xf32>
    %3 = vector.broadcast %2 : vector<1x32xf32> to vector<64x32xf32>
    %4 = arith.subf %0, %3 : vector<64x32xf32>
    %5 = vector.broadcast %1 : vector<1x32xf32> to vector<64x32xf32>
    %6 = arith.mulf %5, %4 : vector<64x32xf32>
    %c0_5 = arith.constant 0 : index
    %c0_6 = arith.constant 0 : index
    %7 = vector.load %arg3[%c0_5, %c0_6] : memref<1x32xf32, #tpu.memory_space<vmem>>, vector<1x32xf32>
    %8 = vector.broadcast %7 : vector<1x32xf32> to vector<64x32xf32>
    %9 = arith.mulf %6, %8 : vector<64x32xf32>
    %c0_7 = arith.constant 0 : index
    %c0_8 = arith.constant 0 : index
    %10 = vector.load %arg5[%c0_7, %c0_8] : memref<1x32xf32, #tpu.memory_space<vmem>>, vector<1x32xf32>
    %11 = vector.broadcast %10 : vector<1x32xf32> to vector<64x32xf32>
    %12 = arith.addf %9, %11 : vector<64x32xf32>
    %c0_9 = arith.constant 0 : index
    %c0_10 = arith.constant 0 : index
    %13 = vector.load %arg6[%c0_9, %c0_10] : memref<32x64xf32, #tpu.memory_space<vmem>>, vector<32x64xf32>
    %cst = arith.constant dense<0.000000e+00> : vector<64x64xf32>
    %14 = tpu.matmul %12, %13, %cst {dimension_numbers = #tpu.dot_dimension_numbers<[1], [0], [0], [1], [0, 0, 1, 1], [], []>} : vector<64x32xf32>, vector<32x64xf32>, vector<64x64xf32> -> vector<64x64xf32>
    %c0_11 = arith.constant 0 : index
    %c0_12 = arith.constant 0 : index
    %15 = vector.load %arg7[%c0_11, %c0_12] : memref<1x64xf32, #tpu.memory_space<vmem>>, vector<1x64xf32>
    %16 = vector.broadcast %15 : vector<1x64xf32> to vector<64x64xf32>
    %17 = arith.addf %14, %16 : vector<64x64xf32>
    %cst_13 = arith.constant 0.000000e+00 : f32
    %18 = vector.broadcast %cst_13 : f32 to vector<64x64xf32>
    %19 = arith.maximumf %17, %18 : vector<64x64xf32>
    %c0_14 = arith.constant 0 : index
    %c0_15 = arith.constant 0 : index
    %20 = vector.load %arg8[%c0_14, %c0_15] : memref<64x32xf32, #tpu.memory_space<vmem>>, vector<64x32xf32>
    %cst_16 = arith.constant dense<0.000000e+00> : vector<64x32xf32>
    %21 = tpu.matmul %19, %20, %cst_16 {dimension_numbers = #tpu.dot_dimension_numbers<[1], [0], [0], [1], [0, 0, 1, 1], [], []>} : vector<64x64xf32>, vector<64x32xf32>, vector<64x32xf32> -> vector<64x32xf32>
    %c0_17 = arith.constant 0 : index
    %c0_18 = arith.constant 0 : index
    %22 = vector.load %arg9[%c0_17, %c0_18] : memref<1x32xf32, #tpu.memory_space<vmem>>, vector<1x32xf32>
    %23 = vector.broadcast %22 : vector<1x32xf32> to vector<64x32xf32>
    %24 = arith.addf %21, %23 : vector<64x32xf32>
    %25 = arith.addf %0, %24 : vector<64x32xf32>
    %c0_19 = arith.constant 0 : index
    %c0_20 = arith.constant 0 : index
    %26 = vector.load %arg10[%c0_19, %c0_20] : memref<64x32xf32, #tpu.memory_space<vmem>>, vector<64x32xf32>
    tpu.vector_store %arg10[%c0_19, %c0_20], %25 {strides = array<i32>} : memref<64x32xf32, #tpu.memory_space<vmem>>, vector<64x32xf32>,
    return
  }
  func.func @transform_0(%arg0: i32) -> (i32, i32) {
    %c0_i32 = arith.constant 0 : i32
    %c0_i32_0 = arith.constant 0 : i32
    return %arg0, %c0_i32 : i32, i32
  }
  func.func @transform_1(%arg0: i32) -> (i32, i32) {
    %c0_i32 = arith.constant 0 : i32
    %c0_i32_0 = arith.constant 0 : i32
    %c0_i32_1 = arith.constant 0 : i32
    return %c0_i32, %c0_i32_0 : i32, i32
  }
  func.func @transform_2(%arg0: i32) -> (i32, i32) {
    %c0_i32 = arith.constant 0 : i32
    %c0_i32_0 = arith.constant 0 : i32
    %c0_i32_1 = arith.constant 0 : i32
    return %c0_i32, %c0_i32_0 : i32, i32
  }
  func.func @transform_3(%arg0: i32) -> (i32, i32) {
    %c0_i32 = arith.constant 0 : i32
    %c0_i32_0 = arith.constant 0 : i32
    %c0_i32_1 = arith.constant 0 : i32
    return %c0_i32, %c0_i32_0 : i32, i32
  }
  func.func @transform_4(%arg0: i32) -> (i32, i32) {
    %c0_i32 = arith.constant 0 : i32
    %c0_i32_0 = arith.constant 0 : i32
    %c0_i32_1 = arith.constant 0 : i32
    return %c0_i32, %c0_i32_0 : i32, i32
  }
  func.func @transform_5(%arg0: i32) -> (i32, i32) {
    %c0_i32 = arith.constant 0 : i32
    %c0_i32_0 = arith.constant 0 : i32
    %c0_i32_1 = arith.constant 0 : i32
    return %c0_i32, %c0_i32_0 : i32, i32
  }
  func.func @transform_6(%arg0: i32) -> (i32, i32) {
    %c0_i32 = arith.constant 0 : i32
    %c0_i32_0 = arith.constant 0 : i32
    %c0_i32_1 = arith.constant 0 : i32
    return %c0_i32, %c0_i32_0 : i32, i32
  }
  func.func @transform_7(%arg0: i32) -> (i32, i32) {
    %c0_i32 = arith.constant 0 : i32
    %c0_i32_0 = arith.constant 0 : i32
    %c0_i32_1 = arith.constant 0 : i32
    return %c0_i32, %c0_i32_0 : i32, i32
  }
  func.func @transform_8(%arg0: i32) -> (i32, i32) {
    %c0_i32 = arith.constant 0 : i32
    %c0_i32_0 = arith.constant 0 : i32
    %c0_i32_1 = arith.constant 0 : i32
    return %c0_i32, %c0_i32_0 : i32, i32
  }
  func.func @transform_9(%arg0: i32) -> (i32, i32) {
    %c0_i32 = arith.constant 0 : i32
    %c0_i32_0 = arith.constant 0 : i32
    return %arg0, %c0_i32 : i32, i32
  }
}

</mosaic_0001>

<llo_original>
// kernel: encoder_layer.4
$region0: #{encoder_layer.4}
  #allocation0 [shape = 'u32[]', space=smem, size = 0x4, offset = 0x4, fixed_abs, tag = 'smem constant byte address 0x4 - core index']
  #allocation1 [shape = 'u32[144,128]{1,0:T(1,128)}', space=vmem, size = 0x12000, scoped, tag = 'internal scratch']
  #allocation2 [shape = 'f32[1,32]{1,0:T(1,128)}', space=vmem, size = 0x200, scoped, tag = 'scratch operand']
  #allocation3 [shape = 'f32[1,32]{1,0:T(1,128)}', space=vmem, size = 0x200, scoped, tag = 'scratch operand']
  %s0 = inlined_call_operand.vmem [shape: f32[128,32], index: 0, kind: input, shape index: {}]
  %s1 = inlined_call_operand.vmem [shape: f32[1,32], index: 1, kind: output, shape index: {0}]
  %s2 = inlined_call_operand.vmem [shape: f32[1,32], index: 2, kind: output, shape index: {1}]
  %3 = xla_tuple %s1, %s2
  %s4 = sld [smem:[#allocation0]]
  $region53: #{encoder_layer.4} parent=0
    _
  %s6 = ssub.s32 1, %s4
  %s7 = scalar_select 0, %s6, %s4
  loop: start=0, step=1, limit=4
  $region2: #{encoder_layer.4} parent=0 // loop_pre_header
    _
  $region3: #{encoder_layer.4} parent=0 // loop_header
    %s9 = sphi 0, %s13
    %p10 = scmp.ge.s32.totalorder %s9, 4
    %s19 = sphi 0, %s21
    %s22 = sphi 0, %s19
    %s23 = sphi 0, %s22
    %s39 = sphi 0, %s23
    %s43 = sphi 0, %s43
    %s45 = sphi 0, %s43
    %s46 = sphi 0, %s45
    %s60 = sphi 0, %s46
    %s64 = sphi 0, %s64
    %s66 = sphi 0, %s64
    %s67 = sphi 0, %s66
    %s81 = sphi 0, %s67
  $region4: #{encoder_layer.4} parent=0 // loop_header_branch
    %12 = sbr.rel (%p10) target = $region8
  $region5: #{encoder_layer.4} parent=0 // loop_body
    %s14 = ssub.s32 %s9, 1
    %s15 = ssub.s32 %s9, 2
    %s16 = sadd.s32 %s9, 1
    %s17 = ssub.s32 %s9, %s16
    %p18 = scmp.eq.s32.totalorder %s17, 0
    %s20 = sadd.s32 %s19, 1
    %s21 = scalar_select %p18, %s19, %s20
    %p24 = pneg %p18
    %p25 = scmp.eq.s32.totalorder %s9, 1
    %p26 = por %p24, %p25
    %p27 = scmp.ne.s32.totalorder %s19, %s22
    %p28 = scmp.eq.s32.totalorder %s9, 0
    %p29 = por %p27, %p28
    %p30 = scmp.ne.s32.totalorder %s19, %s22
    %p31 = scmp.eq.s32.totalorder %s14, 1
    %p32 = por %p30, %p31
    %p33 = scmp.ne.s32.totalorder %s22, %s23
    %p34 = scmp.eq.s32.totalorder %s14, 0
    %p35 = por %p33, %p34
    %p36 = scmp.ne.s32.totalorder %s22, %s23
    %p37 = scmp.eq.s32.totalorder %s15, 1
    %p38 = por %p36, %p37
    %p40 = scmp.ne.s32.totalorder %s23, %s39
    %p41 = scmp.eq.s32.totalorder %s15, 0
    %p42 = por %p40, %p41
    %s44 = sadd.s32 %s43, 1
    %p47 = scmp.eq.s32.totalorder %s9, 1
    %p48 = scmp.ne.s32.totalorder %s43, %s45
    %p49 = scmp.eq.s32.totalorder %s9, 0
    %p50 = por %p48, %p49
    %p51 = scmp.ne.s32.totalorder %s43, %s45
    %p52 = scmp.eq.s32.totalorder %s14, 1
    %p53 = por %p51, %p52
    %p54 = scmp.ne.s32.totalorder %s45, %s46
    %p55 = scmp.eq.s32.totalorder %s14, 0
    %p56 = por %p54, %p55
    %p57 = scmp.ne.s32.totalorder %s45, %s46
    %p58 = scmp.eq.s32.totalorder %s15, 1
    %p59 = por %p57, %p58
    %p61 = scmp.ne.s32.totalorder %s46, %s60
    %p62 = scmp.eq.s32.totalorder %s15, 0
    %p63 = por %p61, %p62
    %s65 = sadd.s32 %s64, 1
    %p68 = scmp.eq.s32.totalorder %s9, 1
    %p69 = scmp.ne.s32.totalorder %s64, %s66
    %p70 = scmp.eq.s32.totalorder %s9, 0
    %p71 = por %p69, %p70
    %p72 = scmp.ne.s32.totalorder %s64, %s66
    %p73 = scmp.eq.s32.totalorder %s14, 1
    %p74 = por %p72, %p73
    %p75 = scmp.ne.s32.totalorder %s66, %s67
    %p76 = scmp.eq.s32.totalorder %s14, 0
    %p77 = por %p75, %p76
    %p78 = scmp.ne.s32.totalorder %s66, %s67
    %p79 = scmp.eq.s32.totalorder %s15, 1
    %p80 = por %p78, %p79
    %p82 = scmp.ne.s32.totalorder %s67, %s81
    %p83 = scmp.eq.s32.totalorder %s15, 0
    %p84 = por %p82, %p83
    %p85 = scmp.le.s32.totalorder 1, %s9
    %p86 = scmp.lt.s32.totalorder %s9, 3
    %p87 = pnand %p85, %p86
    %p88 = pneg %p87
    // Predicated region
    $region9: #{encoder_layer.4} parent=5 // pred_check
      _
    $region10: #{encoder_layer.4} parent=5 // pred_check_branch
      %90 = sbr.rel (%p87) target = $region12
    $region11: #{encoder_layer.4} parent=5 // pred_region
      %s91 = ssub.s32 %s9, 1
    $region12: #{encoder_layer.4} parent=5 // pred_fallthru
      _
    %p92 = scmp.lt.s32.totalorder %s9, 2
    // Predicated region
    $region13: #{encoder_layer.4} parent=5 // pred_check
      %p93 = pneg %p92
    $region14: #{encoder_layer.4} parent=5 // pred_check_branch
      %95 = sbr.rel (%p93) target = $region16
    $region15: #{encoder_layer.4} parent=5 // pred_region
      // Predicated region
      $region17: #{encoder_layer.4} parent=15 // pred_check
        %p96 = pneg %p29
      $region18: #{encoder_layer.4} parent=15 // pred_check_branch
        %98 = sbr.rel (%p96) target = $region20
      $region19: #{encoder_layer.4} parent=15 // pred_region
        %s99 = smul.u32 8, %s9
        %p100 = scmp.lt.s32.totalorder %s99, 15
        %s101 = scalar_select %p100, %s99, 15
        %s102 = smul.addr %s101, 8
        %s103 = scalar_lea.vmem %s0, %s102
        %s104 = smul.u32 8, %s9
      $region20: #{encoder_layer.4} parent=15 // pred_fallthru
        _
    $region16: #{encoder_layer.4} parent=5 // pred_fallthru
      _
    %p105 = scmp.le.s32.totalorder 1, %s9
    %p106 = scmp.lt.s32.totalorder %s9, 3
    %p107 = pnand %p105, %p106
    %p108 = pneg %p107
    // Predicated region
    $region21: #{encoder_layer.4} parent=5 // pred_check
      _
    $region22: #{encoder_layer.4} parent=5 // pred_check_branch
      %110 = sbr.rel (%p107) target = $region24
    $region23: #{encoder_layer.4} parent=5 // pred_region
      %s111 = ssub.s32 %s9, 1
      %s112 = smul.u32 8, %s14
      %p113 = scmp.lt.s32.totalorder %s112, 15
      %s114 = scalar_select %p113, %s112, 15
      %s115 = smul.addr %s114, 8
      %s116 = scalar_lea.vmem %s0, %s115
      %p117 = pneg %p35
      %p118 = pneg %p32
      %p119 = pneg %p56
      %p120 = pneg %p53
      %p121 = pneg %p77
      %p122 = pneg %p74
      %s123 = smul.u32 8, %s14
      %p124 = scmp.lt.s32.totalorder %s123, 15
      %s125 = scalar_select %p124, %s123, 15
      %s126 = smul.addr %s125, 8
      %s127 = scalar_lea.vmem %s0, %s126
      %s128 = smul.u32 8, %s14
      %p129 = scmp.eq.s32.totalorder %s14, 0
      // Predicated region
      $region25: #{encoder_layer.4} parent=23 // pred_check
        %p130 = pneg %p129
      $region26: #{encoder_layer.4} parent=23 // pred_check_branch
        %132 = sbr.rel (%p130) target = $region28
      $region27: #{encoder_layer.4} parent=23 // pred_region
        %vm133 = vcmask 253952
        %134 = vst.msk [vmem:[#allocation2] sm:$0x1] %vm133, 0.0
        %135 = vst.msk [vmem:[#allocation3] sm:$0x1] %vm133, 0.0
      $region28: #{encoder_layer.4} parent=23 // pred_fallthru
        _
      %v136 = vld [vmem:[%s127] sm:$0xff]
      %v137 = vld [vmem:[%s127 + $0x8] sm:$0xff]
      %v138 = vld [vmem:[%s127 + $0x10] sm:$0xff]
      %v139 = vld [vmem:[%s127 + $0x18] sm:$0xff]
      %v140 = vld [vmem:[%s127 + $0x20] sm:$0xff]
      %v141 = vld [vmem:[%s127 + $0x28] sm:$0xff]
      %v142 = vld [vmem:[%s127 + $0x30] sm:$0xff]
      %v143 = vld [vmem:[%s127 + $0x38] sm:$0xff]
      %v144 = vld [vmem:[#allocation2] sm:$0x1]
      %vm145 = vcmask 261120
      %v146 = vsel %vm145, %v136, 0.0
      %v147 = vsel %vm145, %v137, 0.0
      %v148 = vadd.f32 %v146, %v147
      %v149 = vsel %vm145, %v138, 0.0
      %v150 = vadd.f32 %v148, %v149
      %v151 = vsel %vm145, %v139, 0.0
      %v152 = vadd.f32 %v150, %v151
      %v153 = vsel %vm145, %v140, 0.0
      %v154 = vadd.f32 %v152, %v153
      %v155 = vsel %vm145, %v141, 0.0
      %v156 = vadd.f32 %v154, %v155
      %v157 = vsel %vm145, %v142, 0.0
      %v158 = vadd.f32 %v156, %v157
      %v159 = vsel %vm145, %v143, 0.0
      %v160 = vadd.f32 %v158, %v159
      %v161 = vrot.slane %v160, 4
      %v162 = vadd.f32 %v160, %v161
      %v163 = vrot.slane %v162, 2
      %v164 = vadd.f32 %v162, %v163
      %v165 = vrot.slane %v164, 1
      %v166 = vadd.f32 %v164, %v165
      %v167 = vadd.f32 %v144, %v166
      %vm168 = vcmask 253952
      %169 = vst.msk [vmem:[#allocation2] sm:$0x1] %vm168, %v167
      %v170 = vld [vmem:[#allocation3] sm:$0x1]
      %v171 = vmul.f32 %v136, %v136
      %v172 = vmul.f32 %v137, %v137
      %v173 = vmul.f32 %v138, %v138
      %v174 = vmul.f32 %v139, %v139
      %v175 = vmul.f32 %v140, %v140
      %v176 = vmul.f32 %v141, %v141
      %v177 = vmul.f32 %v142, %v142
      %v178 = vmul.f32 %v143, %v143
      %v179 = vsel %vm145, %v171, 0.0
      %v180 = vsel %vm145, %v172, 0.0
      %v181 = vadd.f32 %v179, %v180
      %v182 = vsel %vm145, %v173, 0.0
      %v183 = vadd.f32 %v181, %v182
      %v184 = vsel %vm145, %v174, 0.0
      %v185 = vadd.f32 %v183, %v184
      %v186 = vsel %vm145, %v175, 0.0
      %v187 = vadd.f32 %v185, %v186
      %v188 = vsel %vm145, %v176, 0.0
      %v189 = vadd.f32 %v187, %v188
      %v190 = vsel %vm145, %v177, 0.0
      %v191 = vadd.f32 %v189, %v190
      %v192 = vsel %vm145, %v178, 0.0
      %v193 = vadd.f32 %v191, %v192
      %v194 = vrot.slane %v193, 4
      %v195 = vadd.f32 %v193, %v194
      %v196 = vrot.slane %v195, 2
      %v197 = vadd.f32 %v195, %v196
      %v198 = vrot.slane %v197, 1
      %v199 = vadd.f32 %v197, %v198
      %v200 = vadd.f32 %v170, %v199
      %201 = vst.msk [vmem:[#allocation3] sm:$0x1] %vm168, %v200
      %p202 = scmp.eq.s32.totalorder %s14, 1
      // Predicated region
      $region29: #{encoder_layer.4} parent=23 // pred_check
        %p203 = pneg %p202
      $region30: #{encoder_layer.4} parent=23 // pred_check_branch
        %205 = sbr.rel (%p203) target = $region32
      $region31: #{encoder_layer.4} parent=23 // pred_region
        %v206 = vld [vmem:[#allocation2] sm:$0x1]
        %v207 = vrcp.pop 128.0
        %v208 = vmul.f32 %v206, %v207
        %v209 = vld [vmem:[#allocation3] sm:$0x1]
        %v210 = vmul.f32 %v208, 128.0
        %v211 = vmul.f32 %v210, %v208
        %v212 = vsub.f32 %v209, %v211
        %v213 = vrcp.pop 127.0
        %v214 = vmul.f32 %v212, %v213
        %v215 = vmax.f32 %v214, 0.0
        %v216 = vrsqrt.pop %v215
        %v217 = vmul.f32 %v215, %v216
        %vm218 = vcmp.eq.f32.partialorder %v215, inf
        %v219 = vsel %vm218, %v215, %v217
        %vm220 = vcmp.eq.f32.partialorder %v215, 0.0
        %v221 = vand.u32 %v215, 2147483648
        %v222 = vsel %vm220, %v221, %v219
        %223 = vst.msk [vmem:[%s1] sm:$0x1] %vm168, %v208
        %v224 = vadd.f32 %v222, 1e-06
        %v225 = vrcp.pop %v224
        %v226 = vmul.f32 1.0, %v225
        %227 = vst.msk [vmem:[%s2] sm:$0x1] %vm168, %v226
      $region32: #{encoder_layer.4} parent=23 // pred_fallthru
        _
      // Predicated region
      $region33: #{encoder_layer.4} parent=23 // pred_check
        %p228 = pneg %p53
      $region34: #{encoder_layer.4} parent=23 // pred_check_branch
        %230 = sbr.rel (%p228) target = $region36
      $region35: #{encoder_layer.4} parent=23 // pred_region
        _
      $region36: #{encoder_layer.4} parent=23 // pred_fallthru
        _
      // Predicated region
      $region37: #{encoder_layer.4} parent=23 // pred_check
        %p231 = pneg %p74
      $region38: #{encoder_layer.4} parent=23 // pred_check_branch
        %233 = sbr.rel (%p231) target = $region40
      $region39: #{encoder_layer.4} parent=23 // pred_region
        _
      $region40: #{encoder_layer.4} parent=23 // pred_fallthru
        _
      // Predicated region
      $region41: #{encoder_layer.4} parent=23 // pred_check
        %p234 = pneg %p53
      $region42: #{encoder_layer.4} parent=23 // pred_check_branch
        %236 = sbr.rel (%p234) target = $region44
      $region43: #{encoder_layer.4} parent=23 // pred_region
        _
      $region44: #{encoder_layer.4} parent=23 // pred_fallthru
        _
      // Predicated region
      $region45: #{encoder_layer.4} parent=23 // pred_check
        %p237 = pneg %p74
      $region46: #{encoder_layer.4} parent=23 // pred_check_branch
        %239 = sbr.rel (%p237) target = $region48
      $region47: #{encoder_layer.4} parent=23 // pred_region
        _
      $region48: #{encoder_layer.4} parent=23 // pred_fallthru
        _
    $region24: #{encoder_layer.4} parent=5 // pred_fallthru
      _
    %p240 = scmp.le.s32.totalorder 2, %s9
    // Predicated region
    $region49: #{encoder_layer.4} parent=5 // pred_check
      %p241 = pneg %p240
    $region50: #{encoder_layer.4} parent=5 // pred_check_branch
      %243 = sbr.rel (%p241) target = $region52
    $region51: #{encoder_layer.4} parent=5 // pred_region
      %s244 = ssub.s32 %s9, 2
    $region52: #{encoder_layer.4} parent=5 // pred_fallthru
      _
  $region6: #{encoder_layer.4} parent=0 // loop_footer
    %s13 = sadd.s32 1, %s9
  $region7: #{encoder_layer.4} parent=0 // loop_footer_branch
    %8 = sbr.rel target = $region3
  $region8: #{encoder_layer.4} parent=0 // loop_exit
    _

// kernel: encoder_layer.7
$region0: #{encoder_layer.7}
  #allocation0 [shape = 'u32[]', space=smem, size = 0x4, offset = 0x4, fixed_abs, tag = 'smem constant byte address 0x4 - core index']
  #allocation1 [shape = 'u32[144,128]{1,0:T(1,128)}', space=vmem, size = 0x12000, scoped, tag = 'internal scratch']
  %s0 = inlined_call_operand.vmem [shape: f32[128,32], index: 0, kind: input, shape index: {}]
  %s1 = inlined_call_operand.vmem [shape: f32[1,32], index: 1, kind: input, shape index: {}]
  %s2 = inlined_call_operand.vmem [shape: f32[1,32], index: 2, kind: input, shape index: {}]
  %s3 = inlined_call_operand.vmem [shape: f32[1,32], index: 3, kind: input, shape index: {}]
  %s4 = inlined_call_operand.vmem [shape: f32[1,32], index: 4, kind: input, shape index: {}]
  %s5 = inlined_call_operand.vmem [shape: f32[32,64], index: 5, kind: input, shape index: {}]
  %s6 = inlined_call_operand.vmem [shape: f32[1,64], index: 6, kind: input, shape index: {}]
  %s7 = inlined_call_operand.vmem [shape: f32[64,32], index: 7, kind: input, shape index: {}]
  %s8 = inlined_call_operand.vmem [shape: f32[1,32], index: 8, kind: input, shape index: {}]
  %s9 = inlined_call_operand.vmem [shape: f32[128,32], index: 9, kind: output, shape index: {}]
  %s10 = sld [smem:[#allocation0]]
  $region69: #{encoder_layer.7} parent=0
    _
  %s12 = ssub.s32 1, %s10
  %s13 = scalar_select 0, %s12, %s10
  loop: start=0, step=1, limit=4
  $region2: #{encoder_layer.7} parent=0 // loop_pre_header
    _
  $region3: #{encoder_layer.7} parent=0 // loop_header
    %s15 = sphi 0, %s19
    %p16 = scmp.ge.s32.totalorder %s15, 4
    %s25 = sphi 0, %s27
    %s28 = sphi 0, %s25
    %s29 = sphi 0, %s28
    %s45 = sphi 0, %s29
    %s49 = sphi 0, %s49
    %s51 = sphi 0, %s49
    %s52 = sphi 0, %s51
    %s66 = sphi 0, %s52
    %s70 = sphi 0, %s70
    %s72 = sphi 0, %s70
    %s73 = sphi 0, %s72
    %s87 = sphi 0, %s73
    %s91 = sphi 0, %s91
    %s93 = sphi 0, %s91
    %s94 = sphi 0, %s93
    %s108 = sphi 0, %s94
    %s112 = sphi 0, %s112
    %s114 = sphi 0, %s112
    %s115 = sphi 0, %s114
    %s129 = sphi 0, %s115
    %s133 = sphi 0, %s133
    %s135 = sphi 0, %s133
    %s136 = sphi 0, %s135
    %s150 = sphi 0, %s136
    %s154 = sphi 0, %s154
    %s156 = sphi 0, %s154
    %s157 = sphi 0, %s156
    %s171 = sphi 0, %s157
    %s175 = sphi 0, %s175
    %s177 = sphi 0, %s175
    %s178 = sphi 0, %s177
    %s192 = sphi 0, %s178
    %s196 = sphi 0, %s196
    %s198 = sphi 0, %s196
    %s199 = sphi 0, %s198
    %s213 = sphi 0, %s199
    %s219 = sphi 0, %s221
    %s222 = sphi 0, %s219
    %s223 = sphi 0, %s222
    %s239 = sphi 0, %s223
  $region4: #{encoder_layer.7} parent=0 // loop_header_branch
    %18 = sbr.rel (%p16) target = $region8
  $region5: #{encoder_layer.7} parent=0 // loop_body
    %s20 = ssub.s32 %s15, 1
    %s21 = ssub.s32 %s15, 2
    %s22 = sadd.s32 %s15, 1
    %s23 = ssub.s32 %s15, %s22
    %p24 = scmp.eq.s32.totalorder %s23, 0
    %s26 = sadd.s32 %s25, 1
    %s27 = scalar_select %p24, %s25, %s26
    %p30 = pneg %p24
    %p31 = scmp.eq.s32.totalorder %s15, 1
    %p32 = por %p30, %p31
    %p33 = scmp.ne.s32.totalorder %s25, %s28
    %p34 = scmp.eq.s32.totalorder %s15, 0
    %p35 = por %p33, %p34
    %p36 = scmp.ne.s32.totalorder %s25, %s28
    %p37 = scmp.eq.s32.totalorder %s20, 1
    %p38 = por %p36, %p37
    %p39 = scmp.ne.s32.totalorder %s28, %s29
    %p40 = scmp.eq.s32.totalorder %s20, 0
    %p41 = por %p39, %p40
    %p42 = scmp.ne.s32.totalorder %s28, %s29
    %p43 = scmp.eq.s32.totalorder %s21, 1
    %p44 = por %p42, %p43
    %p46 = scmp.ne.s32.totalorder %s29, %s45
    %p47 = scmp.eq.s32.totalorder %s21, 0
    %p48 = por %p46, %p47
    %s50 = sadd.s32 %s49, 1
    %p53 = scmp.eq.s32.totalorder %s15, 1
    %p54 = scmp.ne.s32.totalorder %s49, %s51
    %p55 = scmp.eq.s32.totalorder %s15, 0
    %p56 = por %p54, %p55
    %p57 = scmp.ne.s32.totalorder %s49, %s51
    %p58 = scmp.eq.s32.totalorder %s20, 1
    %p59 = por %p57, %p58
    %p60 = scmp.ne.s32.totalorder %s51, %s52
    %p61 = scmp.eq.s32.totalorder %s20, 0
    %p62 = por %p60, %p61
    %p63 = scmp.ne.s32.totalorder %s51, %s52
    %p64 = scmp.eq.s32.totalorder %s21, 1
    %p65 = por %p63, %p64
    %p67 = scmp.ne.s32.totalorder %s52, %s66
    %p68 = scmp.eq.s32.totalorder %s21, 0
    %p69 = por %p67, %p68
    %s71 = sadd.s32 %s70, 1
    %p74 = scmp.eq.s32.totalorder %s15, 1
    %p75 = scmp.ne.s32.totalorder %s70, %s72
    %p76 = scmp.eq.s32.totalorder %s15, 0
    %p77 = por %p75, %p76
    %p78 = scmp.ne.s32.totalorder %s70, %s72
    %p79 = scmp.eq.s32.totalorder %s20, 1
    %p80 = por %p78, %p79
    %p81 = scmp.ne.s32.totalorder %s72, %s73
    %p82 = scmp.eq.s32.totalorder %s20, 0
    %p83 = por %p81, %p82
    %p84 = scmp.ne.s32.totalorder %s72, %s73
    %p85 = scmp.eq.s32.totalorder %s21, 1
    %p86 = por %p84, %p85
    %p88 = scmp.ne.s32.totalorder %s73, %s87
    %p89 = scmp.eq.s32.totalorder %s21, 0
    %p90 = por %p88, %p89
    %s92 = sadd.s32 %s91, 1
    %p95 = scmp.eq.s32.totalorder %s15, 1
    %p96 = scmp.ne.s32.totalorder %s91, %s93
    %p97 = scmp.eq.s32.totalorder %s15, 0
    %p98 = por %p96, %p97
    %p99 = scmp.ne.s32.totalorder %s91, %s93
    %p100 = scmp.eq.s32.totalorder %s20, 1
    %p101 = por %p99, %p100
    %p102 = scmp.ne.s32.totalorder %s93, %s94
    %p103 = scmp.eq.s32.totalorder %s20, 0
    %p104 = por %p102, %p103
    %p105 = scmp.ne.s32.totalorder %s93, %s94
    %p106 = scmp.eq.s32.totalorder %s21, 1
    %p107 = por %p105, %p106
    %p109 = scmp.ne.s32.totalorder %s94, %s108
    %p110 = scmp.eq.s32.totalorder %s21, 0
    %p111 = por %p109, %p110
    %s113 = sadd.s32 %s112, 1
    %p116 = scmp.eq.s32.totalorder %s15, 1
    %p117 = scmp.ne.s32.totalorder %s112, %s114
    %p118 = scmp.eq.s32.totalorder %s15, 0
    %p119 = por %p117, %p118
    %p120 = scmp.ne.s32.totalorder %s112, %s114
    %p121 = scmp.eq.s32.totalorder %s20, 1
    %p122 = por %p120, %p121
    %p123 = scmp.ne.s32.totalorder %s114, %s115
    %p124 = scmp.eq.s32.totalorder %s20, 0
    %p125 = por %p123, %p124
    %p126 = scmp.ne.s32.totalorder %s114, %s115
    %p127 = scmp.eq.s32.totalorder %s21, 1
    %p128 = por %p126, %p127
    %p130 = scmp.ne.s32.totalorder %s115, %s129
    %p131 = scmp.eq.s32.totalorder %s21, 0
    %p132 = por %p130, %p131
    %s134 = sadd.s32 %s133, 1
    %p137 = scmp.eq.s32.totalorder %s15, 1
    %p138 = scmp.ne.s32.totalorder %s133, %s135
    %p139 = scmp.eq.s32.totalorder %s15, 0
    %p140 = por %p138, %p139
    %p141 = scmp.ne.s32.totalorder %s133, %s135
    %p142 = scmp.eq.s32.totalorder %s20, 1
    %p143 = por %p141, %p142
    %p144 = scmp.ne.s32.totalorder %s135, %s136
    %p145 = scmp.eq.s32.totalorder %s20, 0
    %p146 = por %p144, %p145
    %p147 = scmp.ne.s32.totalorder %s135, %s136
    %p148 = scmp.eq.s32.totalorder %s21, 1
    %p149 = por %p147, %p148
    %p151 = scmp.ne.s32.totalorder %s136, %s150
    %p152 = scmp.eq.s32.totalorder %s21, 0
    %p153 = por %p151, %p152
    %s155 = sadd.s32 %s154, 1
    %p158 = scmp.eq.s32.totalorder %s15, 1
    %p159 = scmp.ne.s32.totalorder %s154, %s156
    %p160 = scmp.eq.s32.totalorder %s15, 0
    %p161 = por %p159, %p160
    %p162 = scmp.ne.s32.totalorder %s154, %s156
    %p163 = scmp.eq.s32.totalorder %s20, 1
    %p164 = por %p162, %p163
    %p165 = scmp.ne.s32.totalorder %s156, %s157
    %p166 = scmp.eq.s32.totalorder %s20, 0
    %p167 = por %p165, %p166
    %p168 = scmp.ne.s32.totalorder %s156, %s157
    %p169 = scmp.eq.s32.totalorder %s21, 1
    %p170 = por %p168, %p169
    %p172 = scmp.ne.s32.totalorder %s157, %s171
    %p173 = scmp.eq.s32.totalorder %s21, 0
    %p174 = por %p172, %p173
    %s176 = sadd.s32 %s175, 1
    %p179 = scmp.eq.s32.totalorder %s15, 1
    %p180 = scmp.ne.s32.totalorder %s175, %s177
    %p181 = scmp.eq.s32.totalorder %s15, 0
    %p182 = por %p180, %p181
    %p183 = scmp.ne.s32.totalorder %s175, %s177
    %p184 = scmp.eq.s32.totalorder %s20, 1
    %p185 = por %p183, %p184
    %p186 = scmp.ne.s32.totalorder %s177, %s178
    %p187 = scmp.eq.s32.totalorder %s20, 0
    %p188 = por %p186, %p187
    %p189 = scmp.ne.s32.totalorder %s177, %s178
    %p190 = scmp.eq.s32.totalorder %s21, 1
    %p191 = por %p189, %p190
    %p193 = scmp.ne.s32.totalorder %s178, %s192
    %p194 = scmp.eq.s32.totalorder %s21, 0
    %p195 = por %p193, %p194
    %s197 = sadd.s32 %s196, 1
    %p200 = scmp.eq.s32.totalorder %s15, 1
    %p201 = scmp.ne.s32.totalorder %s196, %s198
    %p202 = scmp.eq.s32.totalorder %s15, 0
    %p203 = por %p201, %p202
    %p204 = scmp.ne.s32.totalorder %s196, %s198
    %p205 = scmp.eq.s32.totalorder %s20, 1
    %p206 = por %p204, %p205
    %p207 = scmp.ne.s32.totalorder %s198, %s199
    %p208 = scmp.eq.s32.totalorder %s20, 0
    %p209 = por %p207, %p208
    %p210 = scmp.ne.s32.totalorder %s198, %s199
    %p211 = scmp.eq.s32.totalorder %s21, 1
    %p212 = por %p210, %p211
    %p214 = scmp.ne.s32.totalorder %s199, %s213
    %p215 = scmp.eq.s32.totalorder %s21, 0
    %p216 = por %p214, %p215
    %s217 = ssub.s32 %s15, %s22
    %p218 = scmp.eq.s32.totalorder %s217, 0
    %s220 = sadd.s32 %s219, 1
    %s221 = scalar_select %p218, %s219, %s220
    %p224 = pneg %p218
    %p225 = scmp.eq.s32.totalorder %s15, 1
    %p226 = por %p224, %p225
    %p227 = scmp.ne.s32.totalorder %s219, %s222
    %p228 = scmp.eq.s32.totalorder %s15, 0
    %p229 = por %p227, %p228
    %p230 = scmp.ne.s32.totalorder %s219, %s222
    %p231 = scmp.eq.s32.totalorder %s20, 1
    %p232 = por %p230, %p231
    %p233 = scmp.ne.s32.totalorder %s222, %s223
    %p234 = scmp.eq.s32.totalorder %s20, 0
    %p235 = por %p233, %p234
    %p236 = scmp.ne.s32.totalorder %s222, %s223
    %p237 = scmp.eq.s32.totalorder %s21, 1
    %p238 = por %p236, %p237
    %p240 = scmp.ne.s32.totalorder %s223, %s239
    %p241 = scmp.eq.s32.totalorder %s21, 0
    %p242 = por %p240, %p241
    %p243 = scmp.le.s32.totalorder 1, %s15
    %p244 = scmp.lt.s32.totalorder %s15, 3
    %p245 = pnand %p243, %p244
    %p246 = pneg %p245
    // Predicated region
    $region9: #{encoder_layer.7} parent=5 // pred_check
      _
    $region10: #{encoder_layer.7} parent=5 // pred_check_branch
      %248 = sbr.rel (%p245) target = $region12
    $region11: #{encoder_layer.7} parent=5 // pred_region
      %s249 = ssub.s32 %s15, 1
      // Predicated region
      $region13: #{encoder_layer.7} parent=11 // pred_check
        %p250 = pneg %p62
      $region14: #{encoder_layer.7} parent=11 // pred_check_branch
        %252 = sbr.rel (%p250) target = $region16
      $region15: #{encoder_layer.7} parent=11 // pred_region
        _
      $region16: #{encoder_layer.7} parent=11 // pred_fallthru
        _
      // Predicated region
      $region17: #{encoder_layer.7} parent=11 // pred_check
        %p253 = pneg %p83
      $region18: #{encoder_layer.7} parent=11 // pred_check_branch
        %255 = sbr.rel (%p253) target = $region20
      $region19: #{encoder_layer.7} parent=11 // pred_region
        _
      $region20: #{encoder_layer.7} parent=11 // pred_fallthru
        _
      // Predicated region
      $region21: #{encoder_layer.7} parent=11 // pred_check
        %p256 = pneg %p104
      $region22: #{encoder_layer.7} parent=11 // pred_check_branch
        %258 = sbr.rel (%p256) target = $region24
      $region23: #{encoder_layer.7} parent=11 // pred_region
        _
      $region24: #{encoder_layer.7} parent=11 // pred_fallthru
        _
      // Predicated region
      $region25: #{encoder_layer.7} parent=11 // pred_check
        %p259 = pneg %p125
      $region26: #{encoder_layer.7} parent=11 // pred_check_branch
        %261 = sbr.rel (%p259) target = $region28
      $region27: #{encoder_layer.7} parent=11 // pred_region
        _
      $region28: #{encoder_layer.7} parent=11 // pred_fallthru
        _
      // Predicated region
      $region29: #{encoder_layer.7} parent=11 // pred_check
        %p262 = pneg %p146
      $region30: #{encoder_layer.7} parent=11 // pred_check_branch
        %264 = sbr.rel (%p262) target = $region32
      $region31: #{encoder_layer.7} parent=11 // pred_region
        _
      $region32: #{encoder_layer.7} parent=11 // pred_fallthru
        _
      // Predicated region
      $region33: #{encoder_layer.7} parent=11 // pred_check
        %p265 = pneg %p167
      $region34: #{encoder_layer.7} parent=11 // pred_check_branch
        %267 = sbr.rel (%p265) target = $region36
      $region35: #{encoder_layer.7} parent=11 // pred_region
        _
      $region36: #{encoder_layer.7} parent=11 // pred_fallthru
        _
      // Predicated region
      $region37: #{encoder_layer.7} parent=11 // pred_check
        %p268 = pneg %p188
      $region38: #{encoder_layer.7} parent=11 // pred_check_branch
        %270 = sbr.rel (%p268) target = $region40
      $region39: #{encoder_layer.7} parent=11 // pred_region
        _
      $region40: #{encoder_layer.7} parent=11 // pred_fallthru
        _
      // Predicated region
      $region41: #{encoder_layer.7} parent=11 // pred_check
        %p271 = pneg %p209
      $region42: #{encoder_layer.7} parent=11 // pred_check_branch
        %273 = sbr.rel (%p271) target = $region44
      $region43: #{encoder_layer.7} parent=11 // pred_region
        _
      $region44: #{encoder_layer.7} parent=11 // pred_fallthru
        _
    $region12: #{encoder_layer.7} parent=5 // pred_fallthru
      _
    %p274 = scmp.lt.s32.totalorder %s15, 2
    // Predicated region
    $region45: #{encoder_layer.7} parent=5 // pred_check
      %p275 = pneg %p274
    $region46: #{encoder_layer.7} parent=5 // pred_check_branch
      %277 = sbr.rel (%p275) target = $region48
    $region47: #{encoder_layer.7} parent=5 // pred_region
      // Predicated region
      $region49: #{encoder_layer.7} parent=47 // pred_check
        %p278 = pneg %p35
      $region50: #{encoder_layer.7} parent=47 // pred_check_branch
        %280 = sbr.rel (%p278) target = $region52
      $region51: #{encoder_layer.7} parent=47 // pred_region
        %s281 = smul.u32 8, %s15
        %p282 = scmp.lt.s32.totalorder %s281, 15
        %s283 = scalar_select %p282, %s281, 15
        %s284 = smul.addr %s283, 8
        %s285 = scalar_lea.vmem %s0, %s284
        %s286 = smul.u32 8, %s15
      $region52: #{encoder_layer.7} parent=47 // pred_fallthru
        _
    $region48: #{encoder_layer.7} parent=5 // pred_fallthru
      _
    %p287 = scmp.le.s32.totalorder 1, %s15
    %p288 = scmp.lt.s32.totalorder %s15, 3
    %p289 = pnand %p287, %p288
    %p290 = pneg %p289
    // Predicated region
    $region53: #{encoder_layer.7} parent=5 // pred_check
      _
    $region54: #{encoder_layer.7} parent=5 // pred_check_branch
      %292 = sbr.rel (%p289) target = $region56
    $region55: #{encoder_layer.7} parent=5 // pred_region
      %s293 = ssub.s32 %s15, 1
      %s294 = smul.u32 8, %s20
      %p295 = scmp.lt.s32.totalorder %s294, 15
      %s296 = scalar_select %p295, %s294, 15
      %s297 = smul.addr %s296, 8
      %s298 = scalar_lea.vmem %s0, %s297
      %p299 = pneg %p41
      %p300 = pneg %p38
      %p301 = pneg %p62
      %p302 = pneg %p59
      %p303 = pneg %p83
      %p304 = pneg %p80
      %p305 = pneg %p104
      %p306 = pneg %p101
      %p307 = pneg %p125
      %p308 = pneg %p122
      %p309 = pneg %p146
      %p310 = pneg %p143
      %p311 = pneg %p167
      %p312 = pneg %p164
      %p313 = pneg %p188
      %p314 = pneg %p185
      %p315 = pneg %p209
      %p316 = pneg %p206
      %p317 = pneg %p235
      %p318 = pneg %p232
      %s319 = smul.u32 8, %s20
      %p320 = scmp.lt.s32.totalorder %s319, 15
      %s321 = scalar_select %p320, %s319, 15
      %s322 = smul.addr %s321, 8
      %s323 = scalar_lea.vmem %s9, %s322
      %s324 = smul.u32 8, %s20
      %p325 = scmp.lt.s32.totalorder %s324, 15
      %s326 = scalar_select %p325, %s324, 15
      %s327 = smul.addr %s326, 8
      %s328 = scalar_lea.vmem %s0, %s327
      %s329 = smul.u32 8, %s20
      %s330 = smul.u32 8, %s20
      %p331 = scmp.lt.s32.totalorder %s330, 15
      %s332 = scalar_select %p331, %s330, 15
      %s333 = smul.addr %s332, 8
      %s334 = scalar_lea.vmem %s9, %s333
      %s335 = smul.u32 8, %s20
      %v336 = vld [vmem:[%s328] sm:$0xff]
      %v337 = vld [vmem:[%s328 + $0x8] sm:$0xff]
      %v338 = vld [vmem:[%s328 + $0x10] sm:$0xff]
      %v339 = vld [vmem:[%s328 + $0x18] sm:$0xff]
      %v340 = vld [vmem:[%s328 + $0x20] sm:$0xff]
      %v341 = vld [vmem:[%s328 + $0x28] sm:$0xff]
      %v342 = vld [vmem:[%s328 + $0x30] sm:$0xff]
      %v343 = vld [vmem:[%s328 + $0x38] sm:$0xff]
      %v344 = vld [vmem:[%s3] sm:$0x1]
      %v345 = vld [vmem:[%s1] sm:$0x1]
      %v347 = vlaneseq
      %v348 = vshrl.u32 %v347, 7
      %v349 = vsub.s32 0, %v348
      %v350 = vrot.slane %v345, %v349
      %v352 = vsub.f32 %v336, %v350
      %v353 = vsub.f32 %v337, %v350
      %v354 = vsub.f32 %v338, %v350
      %v355 = vsub.f32 %v339, %v350
      %v356 = vsub.f32 %v340, %v350
      %v357 = vsub.f32 %v341, %v350
      %v358 = vsub.f32 %v342, %v350
      %v359 = vsub.f32 %v343, %v350
      %v361 = vlaneseq
      %v362 = vshrl.u32 %v361, 7
      %v363 = vsub.s32 0, %v362
      %v364 = vrot.slane %v344, %v363
      %v366 = vmul.f32 %v364, %v352
      %v367 = vmul.f32 %v364, %v353
      %v368 = vmul.f32 %v364, %v354
      %v369 = vmul.f32 %v364, %v355
      %v370 = vmul.f32 %v364, %v356
      %v371 = vmul.f32 %v364, %v357
      %v372 = vmul.f32 %v364, %v358
      %v373 = vmul.f32 %v364, %v359
      %v374 = vld [vmem:[%s2] sm:$0x1]
      %v376 = vlaneseq
      %v377 = vshrl.u32 %v376, 7
      %v378 = vsub.s32 0, %v377
      %v379 = vrot.slane %v374, %v378
      %v381 = vmul.f32 %v366, %v379
      %v382 = vmul.f32 %v367, %v379
      %v383 = vmul.f32 %v368, %v379
      %v384 = vmul.f32 %v369, %v379
      %v385 = vmul.f32 %v370, %v379
      %v386 = vmul.f32 %v371, %v379
      %v387 = vmul.f32 %v372, %v379
      %v388 = vmul.f32 %v373, %v379
      %v389 = vld [vmem:[%s4] sm:$0x1]
      %v391 = vlaneseq
      %v392 = vshrl.u32 %v391, 7
      %v393 = vsub.s32 0, %v392
      %v394 = vrot.slane %v389, %v393
      %v396 = vadd.f32 %v381, %v394
      %v397 = vadd.f32 %v382, %v394
      %v398 = vadd.f32 %v383, %v394
      %v399 = vadd.f32 %v384, %v394
      %v400 = vadd.f32 %v385, %v394
      %v401 = vadd.f32 %v386, %v394
      %v402 = vadd.f32 %v387, %v394
      %v403 = vadd.f32 %v388, %v394
      %v404 = vld [vmem:[%s5] sm:$0xff]
      %v405 = vld [vmem:[%s5 + $0x8] sm:$0xff]
      %v406 = vld [vmem:[%s5 + $0x10] sm:$0xff]
      %v407 = vld [vmem:[%s5 + $0x18] sm:$0xff]
      %v408 = vld [vmem:[%s6] sm:$0x1]
      %v410 = vlaneseq
      %v411 = vshrl.u32 %v410, 7
      %v412 = vsub.s32 0, %v411
      %v413 = vrot.slane %v408, %v412
      %vm415 = vcmask 261120
      %v417 = vsel %vm415, %v396, 0
      %v420 = vsel %vm415, %v397, 0
      %v423 = vsel %vm415, %v398, 0
      %v426 = vsel %vm415, %v399, 0
      %v429 = vsel %vm415, %v400, 0
      %v432 = vsel %vm415, %v401, 0
      %v435 = vsel %vm415, %v402, 0
      %v438 = vsel %vm415, %v403, 0
      %440 = vmatprep.subr.mxu0 0.0
      %441 = vmatpush1.msra.mxu0 0.0
      %442 = vmatprep.subr.mxu0 0.0
      %443 = vmatpush1.msra.mxu0 0.0
      %444 = vmatprep.subr.mxu0 0.0
      %445 = vmatpush1.msra.mxu0 0.0
      %446 = vmatprep.subr.mxu0 0.0
      %447 = vmatpush1.msra.mxu0 0.0
      %448 = vmatprep.subr.mxu0 0.0
      %449 = vmatpush1.msra.mxu0 0.0
      %450 = vmatprep.subr.mxu0 0.0
      %451 = vmatpush1.msra.mxu0 0.0
      %452 = vmatprep.subr.mxu0 0.0
      %453 = vmatpush1.msra.mxu0 0.0
      %454 = vmatprep.subr.mxu0 0.0
      %455 = vmatpush1.msra.mxu0 0.0
      %456 = vmatprep.subr.mxu0 0.0
      %457 = vmatpush1.msra.mxu0 0.0
      %458 = vmatprep.subr.mxu0 0.0
      %459 = vmatpush1.msra.mxu0 0.0
      %460 = vmatprep.subr.mxu0 0.0
      %461 = vmatpush1.msra.mxu0 0.0
      %462 = vmatprep.subr.mxu0 0.0
      %463 = vmatpush1.msra.mxu0 0.0
      %464 = vmatprep.subr.mxu0 0.0
      %465 = vmatpush1.msra.mxu0 %v407
      %466 = vmatprep.subr.mxu0 0.0
      %467 = vmatpush1.msra.mxu0 %v406
      %468 = vmatprep.subr.mxu0 0.0
      %469 = vmatpush1.msra.mxu0 %v405
      %470 = vmatprep.subr.mxu0 0.0
      %471 = vmatpush1.msra.mxu0 %v404
      %472 = vmatprep.subr.mxu0 0.0
      %473 = vmatpush2.msra.mxu0 0.0
      %474 = vmatprep.subr.mxu0 0.0
      %475 = vmatpush2.msra.mxu0 0.0
      %476 = vmatprep.subr.mxu0 0.0
      %477 = vmatpush2.msra.mxu0 0.0
      %478 = vmatprep.subr.mxu0 0.0
      %479 = vmatpush2.msra.mxu0 0.0
      %480 = vmatprep.subr.mxu0 0.0
      %481 = vmatpush2.msra.mxu0 0.0
      %482 = vmatprep.subr.mxu0 0.0
      %483 = vmatpush2.msra.mxu0 0.0
      %484 = vmatprep.subr.mxu0 0.0
      %485 = vmatpush2.msra.mxu0 0.0
      %486 = vmatprep.subr.mxu0 0.0
      %487 = vmatpush2.msra.mxu0 0.0
      %488 = vmatprep.subr.mxu0 0.0
      %489 = vmatpush2.msra.mxu0 0.0
      %490 = vmatprep.subr.mxu0 0.0
      %491 = vmatpush2.msra.mxu0 0.0
      %492 = vmatprep.subr.mxu0 0.0
      %493 = vmatpush2.msra.mxu0 0.0
      %494 = vmatprep.subr.mxu0 0.0
      %495 = vmatpush2.msra.mxu0 0.0
      %496 = vmatprep.subr.mxu0 0.0
      %497 = vmatpush2.msra.mxu0 0.0
      %498 = vmatprep.subr.mxu0 0.0
      %499 = vmatpush2.msra.mxu0 0.0
      %500 = vmatprep.subr.mxu0 0.0
      %501 = vmatpush2.msra.mxu0 0.0
      %502 = vmatprep.subr.mxu0 0.0
      %503 = vmatpush2.msra.mxu0 0.0
      %504 = vmatprep.mubr.f32.mxu0 0.0
      %505 = vmatmul.mubr.f32.gmra.mxu0 %v417
      %v506 = vpop.f32.mrf.mxu0
      %v507 = vadd.f32 %v413, %v506
      %v508 = vpop.f32.mrf.mxu0
      %509 = vmatprep.mubr.f32.mxu0 0.0
      %510 = vmatmul.mubr.f32.gmra.mxu0 %v420
      %v511 = vpop.f32.mrf.mxu0
      %v512 = vadd.f32 %v413, %v511
      %v513 = vpop.f32.mrf.mxu0
      %514 = vmatprep.mubr.f32.mxu0 0.0
      %515 = vmatmul.mubr.f32.gmra.mxu0 %v423
      %v516 = vpop.f32.mrf.mxu0
      %v517 = vadd.f32 %v413, %v516
      %v518 = vpop.f32.mrf.mxu0
      %519 = vmatprep.mubr.f32.mxu0 0.0
      %520 = vmatmul.mubr.f32.gmra.mxu0 %v426
      %v521 = vpop.f32.mrf.mxu0
      %v522 = vadd.f32 %v413, %v521
      %v523 = vpop.f32.mrf.mxu0
      %524 = vmatprep.mubr.f32.mxu0 0.0
      %525 = vmatmul.mubr.f32.gmra.mxu0 %v429
      %v526 = vpop.f32.mrf.mxu0
      %v527 = vadd.f32 %v413, %v526
      %v528 = vpop.f32.mrf.mxu0
      %529 = vmatprep.mubr.f32.mxu0 0.0
      %530 = vmatmul.mubr.f32.gmra.mxu0 %v432
      %v531 = vpop.f32.mrf.mxu0
      %v532 = vadd.f32 %v413, %v531
      %v533 = vpop.f32.mrf.mxu0
      %534 = vmatprep.mubr.f32.mxu0 0.0
      %535 = vmatmul.mubr.f32.gmra.mxu0 %v435
      %v536 = vpop.f32.mrf.mxu0
      %v537 = vadd.f32 %v413, %v536
      %v538 = vpop.f32.mrf.mxu0
      %539 = vmatprep.mubr.f32.mxu0 0.0
      %540 = vmatmul.mubr.f32.gmra.mxu0 %v438
      %v541 = vpop.f32.mrf.mxu0
      %v542 = vadd.f32 %v413, %v541
      %v543 = vpop.f32.mrf.mxu0
      %544 = vdwg.mxu0
      %v545 = vmax.f32 %v507, 0.0
      %v546 = vmax.f32 %v512, 0.0
      %v547 = vmax.f32 %v517, 0.0
      %v548 = vmax.f32 %v522, 0.0
      %v549 = vmax.f32 %v527, 0.0
      %v550 = vmax.f32 %v532, 0.0
      %v551 = vmax.f32 %v537, 0.0
      %v552 = vmax.f32 %v542, 0.0
      %v553 = vld [vmem:[%s7] sm:$0xff]
      %v554 = vld [vmem:[%s7 + $0x8] sm:$0xff]
      %v555 = vld [vmem:[%s7 + $0x10] sm:$0xff]
      %v556 = vld [vmem:[%s7 + $0x18] sm:$0xff]
      %v557 = vld [vmem:[%s7 + $0x20] sm:$0xff]
      %v558 = vld [vmem:[%s7 + $0x28] sm:$0xff]
      %v559 = vld [vmem:[%s7 + $0x30] sm:$0xff]
      %v560 = vld [vmem:[%s7 + $0x38] sm:$0xff]
      %v561 = vld [vmem:[%s8] sm:$0x1]
      %v563 = vlaneseq
      %v564 = vshrl.u32 %v563, 7
      %v565 = vsub.s32 0, %v564
      %v566 = vrot.slane %v561, %v565
      %vm568 = vcmask 523264
      %v570 = vsel %vm568, %v545, 0
      %v573 = vsel %vm568, %v546, 0
      %v576 = vsel %vm568, %v547, 0
      %v579 = vsel %vm568, %v548, 0
      %v582 = vsel %vm568, %v549, 0
      %v585 = vsel %vm568, %v550, 0
      %v588 = vsel %vm568, %v551, 0
      %v591 = vsel %vm568, %v552, 0
      %593 = vmatprep.subr.mxu0 0.0
      %594 = vmatpush1.msra.mxu0 0.0
      %595 = vmatprep.subr.mxu0 0.0
      %596 = vmatpush1.msra.mxu0 0.0
      %597 = vmatprep.subr.mxu0 0.0
      %598 = vmatpush1.msra.mxu0 0.0
      %599 = vmatprep.subr.mxu0 0.0
      %600 = vmatpush1.msra.mxu0 0.0
      %601 = vmatprep.subr.mxu0 0.0
      %602 = vmatpush1.msra.mxu0 0.0
      %603 = vmatprep.subr.mxu0 0.0
      %604 = vmatpush1.msra.mxu0 0.0
      %605 = vmatprep.subr.mxu0 0.0
      %606 = vmatpush1.msra.mxu0 0.0
      %607 = vmatprep.subr.mxu0 0.0
      %608 = vmatpush1.msra.mxu0 0.0
      %609 = vmatprep.subr.mxu0 0.0
      %610 = vmatpush1.msra.mxu0 %v560
      %611 = vmatprep.subr.mxu0 0.0
      %612 = vmatpush1.msra.mxu0 %v559
      %613 = vmatprep.subr.mxu0 0.0
      %614 = vmatpush1.msra.mxu0 %v558
      %615 = vmatprep.subr.mxu0 0.0
      %616 = vmatpush1.msra.mxu0 %v557
      %617 = vmatprep.subr.mxu0 0.0
      %618 = vmatpush1.msra.mxu0 %v556
      %619 = vmatprep.subr.mxu0 0.0
      %620 = vmatpush1.msra.mxu0 %v555
      %621 = vmatprep.subr.mxu0 0.0
      %622 = vmatpush1.msra.mxu0 %v554
      %623 = vmatprep.subr.mxu0 0.0
      %624 = vmatpush1.msra.mxu0 %v553
      %625 = vmatprep.subr.mxu0 0.0
      %626 = vmatpush2.msra.mxu0 0.0
      %627 = vmatprep.subr.mxu0 0.0
      %628 = vmatpush2.msra.mxu0 0.0
      %629 = vmatprep.subr.mxu0 0.0
      %630 = vmatpush2.msra.mxu0 0.0
      %631 = vmatprep.subr.mxu0 0.0
      %632 = vmatpush2.msra.mxu0 0.0
      %633 = vmatprep.subr.mxu0 0.0
      %634 = vmatpush2.msra.mxu0 0.0
      %635 = vmatprep.subr.mxu0 0.0
      %636 = vmatpush2.msra.mxu0 0.0
      %637 = vmatprep.subr.mxu0 0.0
      %638 = vmatpush2.msra.mxu0 0.0
      %639 = vmatprep.subr.mxu0 0.0
      %640 = vmatpush2.msra.mxu0 0.0
      %641 = vmatprep.subr.mxu0 0.0
      %642 = vmatpush2.msra.mxu0 0.0
      %643 = vmatprep.subr.mxu0 0.0
      %644 = vmatpush2.msra.mxu0 0.0
      %645 = vmatprep.subr.mxu0 0.0
      %646 = vmatpush2.msra.mxu0 0.0
      %647 = vmatprep.subr.mxu0 0.0
      %648 = vmatpush2.msra.mxu0 0.0
      %649 = vmatprep.subr.mxu0 0.0
      %650 = vmatpush2.msra.mxu0 0.0
      %651 = vmatprep.subr.mxu0 0.0
      %652 = vmatpush2.msra.mxu0 0.0
      %653 = vmatprep.subr.mxu0 0.0
      %654 = vmatpush2.msra.mxu0 0.0
      %655 = vmatprep.subr.mxu0 0.0
      %656 = vmatpush2.msra.mxu0 0.0
      %657 = vmatprep.mubr.f32.mxu0 0.0
      %658 = vmatmul.mubr.f32.gmra.mxu0 %v570
      %v659 = vpop.f32.mrf.mxu0
      %v660 = vadd.f32 %v566, %v659
      %v661 = vpop.f32.mrf.mxu0
      %662 = vmatprep.mubr.f32.mxu0 0.0
      %663 = vmatmul.mubr.f32.gmra.mxu0 %v573
      %v664 = vpop.f32.mrf.mxu0
      %v665 = vadd.f32 %v566, %v664
      %v666 = vpop.f32.mrf.mxu0
      %667 = vmatprep.mubr.f32.mxu0 0.0
      %668 = vmatmul.mubr.f32.gmra.mxu0 %v576
      %v669 = vpop.f32.mrf.mxu0
      %v670 = vadd.f32 %v566, %v669
      %v671 = vpop.f32.mrf.mxu0
      %672 = vmatprep.mubr.f32.mxu0 0.0
      %673 = vmatmul.mubr.f32.gmra.mxu0 %v579
      %v674 = vpop.f32.mrf.mxu0
      %v675 = vadd.f32 %v566, %v674
      %v676 = vpop.f32.mrf.mxu0
      %677 = vmatprep.mubr.f32.mxu0 0.0
      %678 = vmatmul.mubr.f32.gmra.mxu0 %v582
      %v679 = vpop.f32.mrf.mxu0
      %v680 = vadd.f32 %v566, %v679
      %v681 = vpop.f32.mrf.mxu0
      %682 = vmatprep.mubr.f32.mxu0 0.0
      %683 = vmatmul.mubr.f32.gmra.mxu0 %v585
      %v684 = vpop.f32.mrf.mxu0
      %v685 = vadd.f32 %v566, %v684
      %v686 = vpop.f32.mrf.mxu0
      %687 = vmatprep.mubr.f32.mxu0 0.0
      %688 = vmatmul.mubr.f32.gmra.mxu0 %v588
      %v689 = vpop.f32.mrf.mxu0
      %v690 = vadd.f32 %v566, %v689
      %v691 = vpop.f32.mrf.mxu0
      %692 = vmatprep.mubr.f32.mxu0 0.0
      %693 = vmatmul.mubr.f32.gmra.mxu0 %v591
      %v694 = vpop.f32.mrf.mxu0
      %v695 = vadd.f32 %v566, %v694
      %v696 = vpop.f32.mrf.mxu0
      %697 = vdwg.mxu0
      %v698 = vadd.f32 %v336, %v660
      %v699 = vadd.f32 %v337, %v665
      %v700 = vadd.f32 %v338, %v670
      %v701 = vadd.f32 %v339, %v675
      %v702 = vadd.f32 %v340, %v680
      %v703 = vadd.f32 %v341, %v685
      %v704 = vadd.f32 %v342, %v690
      %v705 = vadd.f32 %v343, %v695
      %706 = vst.msk [vmem:[%s334] sm:$0xff] %vm415, %v698
      %707 = vst.msk [vmem:[%s334 + $0x8] sm:$0xff] %vm415, %v699
      %708 = vst.msk [vmem:[%s334 + $0x10] sm:$0xff] %vm415, %v700
      %709 = vst.msk [vmem:[%s334 + $0x18] sm:$0xff] %vm415, %v701
      %710 = vst.msk [vmem:[%s334 + $0x20] sm:$0xff] %vm415, %v702
      %711 = vst.msk [vmem:[%s334 + $0x28] sm:$0xff] %vm415, %v703
      %712 = vst.msk [vmem:[%s334 + $0x30] sm:$0xff] %vm415, %v704
      %713 = vst.msk [vmem:[%s334 + $0x38] sm:$0xff] %vm415, %v705
      %s714 = smul.u32 8, %s20
      %p715 = scmp.lt.s32.totalorder %s714, 15
      %s716 = scalar_select %p715, %s714, 15
      %s717 = smul.addr %s716, 8
      %s718 = scalar_lea.vmem %s9, %s717
      // Predicated region
      $region57: #{encoder_layer.7} parent=55 // pred_check
        %p719 = pneg %p232
      $region58: #{encoder_layer.7} parent=55 // pred_check_branch
        %721 = sbr.rel (%p719) target = $region60
      $region59: #{encoder_layer.7} parent=55 // pred_region
        %s722 = smul.u32 8, %s20
      $region60: #{encoder_layer.7} parent=55 // pred_fallthru
        _
    $region56: #{encoder_layer.7} parent=5 // pred_fallthru
      _
    %p723 = scmp.le.s32.totalorder 2, %s15
    // Predicated region
    $region61: #{encoder_layer.7} parent=5 // pred_check
      %p724 = pneg %p723
    $region62: #{encoder_layer.7} parent=5 // pred_check_branch
      %726 = sbr.rel (%p724) target = $region64
    $region63: #{encoder_layer.7} parent=5 // pred_region
      %s727 = ssub.s32 %s15, 2
      // Predicated region
      $region65: #{encoder_layer.7} parent=63 // pred_check
        %p728 = pneg %p238
      $region66: #{encoder_layer.7} parent=63 // pred_check_branch
        %730 = sbr.rel (%p728) target = $region68
      $region67: #{encoder_layer.7} parent=63 // pred_region
        %s731 = smul.u32 8, %s21
        %p732 = scmp.lt.s32.totalorder %s731, 15
        %s733 = scalar_select %p732, %s731, 15
        %s734 = smul.addr %s733, 8
        %s735 = scalar_lea.vmem %s9, %s734
      $region68: #{encoder_layer.7} parent=63 // pred_fallthru
        _
    $region64: #{encoder_layer.7} parent=5 // pred_fallthru
      _
  $region6: #{encoder_layer.7} parent=0 // loop_footer
    %s19 = sadd.s32 1, %s15
  $region7: #{encoder_layer.7} parent=0 // loop_footer_branch
    %14 = sbr.rel target = $region3
  $region8: #{encoder_layer.7} parent=0 // loop_exit
    _

// kernel: encoder_layer.5
$region0: #{encoder_layer.5}
  #allocation0 [shape = 'u32[]', space=smem, size = 0x4, offset = 0x4, fixed_abs, tag = 'smem constant byte address 0x4 - core index']
  #allocation1 [shape = 'u32[144,128]{1,0:T(1,128)}', space=vmem, size = 0x12000, scoped, tag = 'internal scratch']
  %s0 = inlined_call_operand.vmem [shape: f32[2,64,32], index: 0, kind: input, shape index: {}]
  %s1 = inlined_call_operand.vmem [shape: f32[1,32], index: 1, kind: input, shape index: {}]
  %s2 = inlined_call_operand.vmem [shape: f32[1,32], index: 2, kind: input, shape index: {}]
  %s3 = inlined_call_operand.vmem [shape: f32[1,32], index: 3, kind: input, shape index: {}]
  %s4 = inlined_call_operand.vmem [shape: f32[1,32], index: 4, kind: input, shape index: {}]
  %s5 = inlined_call_operand.vmem [shape: f32[32,96], index: 5, kind: input, shape index: {}]
  %s6 = inlined_call_operand.vmem [shape: f32[1,96], index: 6, kind: input, shape index: {}]
  %s7 = inlined_call_operand.vmem [shape: f32[32,32], index: 7, kind: input, shape index: {}]
  %s8 = inlined_call_operand.vmem [shape: f32[1,32], index: 8, kind: input, shape index: {}]
  %s9 = inlined_call_operand.vmem [shape: f32[2,64,32], index: 9, kind: output, shape index: {}]
  %s10 = sld [smem:[#allocation0]]
  $region69: #{encoder_layer.5} parent=0
    _
  %s12 = ssub.s32 1, %s10
  %s13 = scalar_select 0, %s12, %s10
  loop: start=0, step=1, limit=4
  $region2: #{encoder_layer.5} parent=0 // loop_pre_header
    _
  $region3: #{encoder_layer.5} parent=0 // loop_header
    %s15 = sphi 0, %s19
    %p16 = scmp.ge.s32.totalorder %s15, 4
    %s25 = sphi 0, %s27
    %s28 = sphi 0, %s25
    %s29 = sphi 0, %s28
    %s45 = sphi 0, %s29
    %s49 = sphi 0, %s49
    %s51 = sphi 0, %s49
    %s52 = sphi 0, %s51
    %s66 = sphi 0, %s52
    %s70 = sphi 0, %s70
    %s72 = sphi 0, %s70
    %s73 = sphi 0, %s72
    %s87 = sphi 0, %s73
    %s91 = sphi 0, %s91
    %s93 = sphi 0, %s91
    %s94 = sphi 0, %s93
    %s108 = sphi 0, %s94
    %s112 = sphi 0, %s112
    %s114 = sphi 0, %s112
    %s115 = sphi 0, %s114
    %s129 = sphi 0, %s115
    %s133 = sphi 0, %s133
    %s135 = sphi 0, %s133
    %s136 = sphi 0, %s135
    %s150 = sphi 0, %s136
    %s154 = sphi 0, %s154
    %s156 = sphi 0, %s154
    %s157 = sphi 0, %s156
    %s171 = sphi 0, %s157
    %s175 = sphi 0, %s175
    %s177 = sphi 0, %s175
    %s178 = sphi 0, %s177
    %s192 = sphi 0, %s178
    %s196 = sphi 0, %s196
    %s198 = sphi 0, %s196
    %s199 = sphi 0, %s198
    %s213 = sphi 0, %s199
    %s219 = sphi 0, %s221
    %s222 = sphi 0, %s219
    %s223 = sphi 0, %s222
    %s239 = sphi 0, %s223
  $region4: #{encoder_layer.5} parent=0 // loop_header_branch
    %18 = sbr.rel (%p16) target = $region8
  $region5: #{encoder_layer.5} parent=0 // loop_body
    %s20 = ssub.s32 %s15, 1
    %s21 = ssub.s32 %s15, 2
    %s22 = sadd.s32 %s15, 1
    %s23 = ssub.s32 %s15, %s22
    %p24 = scmp.eq.s32.totalorder %s23, 0
    %s26 = sadd.s32 %s25, 1
    %s27 = scalar_select %p24, %s25, %s26
    %p30 = pneg %p24
    %p31 = scmp.eq.s32.totalorder %s15, 1
    %p32 = por %p30, %p31
    %p33 = scmp.ne.s32.totalorder %s25, %s28
    %p34 = scmp.eq.s32.totalorder %s15, 0
    %p35 = por %p33, %p34
    %p36 = scmp.ne.s32.totalorder %s25, %s28
    %p37 = scmp.eq.s32.totalorder %s20, 1
    %p38 = por %p36, %p37
    %p39 = scmp.ne.s32.totalorder %s28, %s29
    %p40 = scmp.eq.s32.totalorder %s20, 0
    %p41 = por %p39, %p40
    %p42 = scmp.ne.s32.totalorder %s28, %s29
    %p43 = scmp.eq.s32.totalorder %s21, 1
    %p44 = por %p42, %p43
    %p46 = scmp.ne.s32.totalorder %s29, %s45
    %p47 = scmp.eq.s32.totalorder %s21, 0
    %p48 = por %p46, %p47
    %s50 = sadd.s32 %s49, 1
    %p53 = scmp.eq.s32.totalorder %s15, 1
    %p54 = scmp.ne.s32.totalorder %s49, %s51
    %p55 = scmp.eq.s32.totalorder %s15, 0
    %p56 = por %p54, %p55
    %p57 = scmp.ne.s32.totalorder %s49, %s51
    %p58 = scmp.eq.s32.totalorder %s20, 1
    %p59 = por %p57, %p58
    %p60 = scmp.ne.s32.totalorder %s51, %s52
    %p61 = scmp.eq.s32.totalorder %s20, 0
    %p62 = por %p60, %p61
    %p63 = scmp.ne.s32.totalorder %s51, %s52
    %p64 = scmp.eq.s32.totalorder %s21, 1
    %p65 = por %p63, %p64
    %p67 = scmp.ne.s32.totalorder %s52, %s66
    %p68 = scmp.eq.s32.totalorder %s21, 0
    %p69 = por %p67, %p68
    %s71 = sadd.s32 %s70, 1
    %p74 = scmp.eq.s32.totalorder %s15, 1
    %p75 = scmp.ne.s32.totalorder %s70, %s72
    %p76 = scmp.eq.s32.totalorder %s15, 0
    %p77 = por %p75, %p76
    %p78 = scmp.ne.s32.totalorder %s70, %s72
    %p79 = scmp.eq.s32.totalorder %s20, 1
    %p80 = por %p78, %p79
    %p81 = scmp.ne.s32.totalorder %s72, %s73
    %p82 = scmp.eq.s32.totalorder %s20, 0
    %p83 = por %p81, %p82
    %p84 = scmp.ne.s32.totalorder %s72, %s73
    %p85 = scmp.eq.s32.totalorder %s21, 1
    %p86 = por %p84, %p85
    %p88 = scmp.ne.s32.totalorder %s73, %s87
    %p89 = scmp.eq.s32.totalorder %s21, 0
    %p90 = por %p88, %p89
    %s92 = sadd.s32 %s91, 1
    %p95 = scmp.eq.s32.totalorder %s15, 1
    %p96 = scmp.ne.s32.totalorder %s91, %s93
    %p97 = scmp.eq.s32.totalorder %s15, 0
    %p98 = por %p96, %p97
    %p99 = scmp.ne.s32.totalorder %s91, %s93
    %p100 = scmp.eq.s32.totalorder %s20, 1
    %p101 = por %p99, %p100
    %p102 = scmp.ne.s32.totalorder %s93, %s94
    %p103 = scmp.eq.s32.totalorder %s20, 0
    %p104 = por %p102, %p103
    %p105 = scmp.ne.s32.totalorder %s93, %s94
    %p106 = scmp.eq.s32.totalorder %s21, 1
    %p107 = por %p105, %p106
    %p109 = scmp.ne.s32.totalorder %s94, %s108
    %p110 = scmp.eq.s32.totalorder %s21, 0
    %p111 = por %p109, %p110
    %s113 = sadd.s32 %s112, 1
    %p116 = scmp.eq.s32.totalorder %s15, 1
    %p117 = scmp.ne.s32.totalorder %s112, %s114
    %p118 = scmp.eq.s32.totalorder %s15, 0
    %p119 = por %p117, %p118
    %p120 = scmp.ne.s32.totalorder %s112, %s114
    %p121 = scmp.eq.s32.totalorder %s20, 1
    %p122 = por %p120, %p121
    %p123 = scmp.ne.s32.totalorder %s114, %s115
    %p124 = scmp.eq.s32.totalorder %s20, 0
    %p125 = por %p123, %p124
    %p126 = scmp.ne.s32.totalorder %s114, %s115
    %p127 = scmp.eq.s32.totalorder %s21, 1
    %p128 = por %p126, %p127
    %p130 = scmp.ne.s32.totalorder %s115, %s129
    %p131 = scmp.eq.s32.totalorder %s21, 0
    %p132 = por %p130, %p131
    %s134 = sadd.s32 %s133, 1
    %p137 = scmp.eq.s32.totalorder %s15, 1
    %p138 = scmp.ne.s32.totalorder %s133, %s135
    %p139 = scmp.eq.s32.totalorder %s15, 0
    %p140 = por %p138, %p139
    %p141 = scmp.ne.s32.totalorder %s133, %s135
    %p142 = scmp.eq.s32.totalorder %s20, 1
    %p143 = por %p141, %p142
    %p144 = scmp.ne.s32.totalorder %s135, %s136
    %p145 = scmp.eq.s32.totalorder %s20, 0
    %p146 = por %p144, %p145
    %p147 = scmp.ne.s32.totalorder %s135, %s136
    %p148 = scmp.eq.s32.totalorder %s21, 1
    %p149 = por %p147, %p148
    %p151 = scmp.ne.s32.totalorder %s136, %s150
    %p152 = scmp.eq.s32.totalorder %s21, 0
    %p153 = por %p151, %p152
    %s155 = sadd.s32 %s154, 1
    %p158 = scmp.eq.s32.totalorder %s15, 1
    %p159 = scmp.ne.s32.totalorder %s154, %s156
    %p160 = scmp.eq.s32.totalorder %s15, 0
    %p161 = por %p159, %p160
    %p162 = scmp.ne.s32.totalorder %s154, %s156
    %p163 = scmp.eq.s32.totalorder %s20, 1
    %p164 = por %p162, %p163
    %p165 = scmp.ne.s32.totalorder %s156, %s157
    %p166 = scmp.eq.s32.totalorder %s20, 0
    %p167 = por %p165, %p166
    %p168 = scmp.ne.s32.totalorder %s156, %s157
    %p169 = scmp.eq.s32.totalorder %s21, 1
    %p170 = por %p168, %p169
    %p172 = scmp.ne.s32.totalorder %s157, %s171
    %p173 = scmp.eq.s32.totalorder %s21, 0
    %p174 = por %p172, %p173
    %s176 = sadd.s32 %s175, 1
    %p179 = scmp.eq.s32.totalorder %s15, 1
    %p180 = scmp.ne.s32.totalorder %s175, %s177
    %p181 = scmp.eq.s32.totalorder %s15, 0
    %p182 = por %p180, %p181
    %p183 = scmp.ne.s32.totalorder %s175, %s177
    %p184 = scmp.eq.s32.totalorder %s20, 1
    %p185 = por %p183, %p184
    %p186 = scmp.ne.s32.totalorder %s177, %s178
    %p187 = scmp.eq.s32.totalorder %s20, 0
    %p188 = por %p186, %p187
    %p189 = scmp.ne.s32.totalorder %s177, %s178
    %p190 = scmp.eq.s32.totalorder %s21, 1
    %p191 = por %p189, %p190
    %p193 = scmp.ne.s32.totalorder %s178, %s192
    %p194 = scmp.eq.s32.totalorder %s21, 0
    %p195 = por %p193, %p194
    %s197 = sadd.s32 %s196, 1
    %p200 = scmp.eq.s32.totalorder %s15, 1
    %p201 = scmp.ne.s32.totalorder %s196, %s198
    %p202 = scmp.eq.s32.totalorder %s15, 0
    %p203 = por %p201, %p202
    %p204 = scmp.ne.s32.totalorder %s196, %s198
    %p205 = scmp.eq.s32.totalorder %s20, 1
    %p206 = por %p204, %p205
    %p207 = scmp.ne.s32.totalorder %s198, %s199
    %p208 = scmp.eq.s32.totalorder %s20, 0
    %p209 = por %p207, %p208
    %p210 = scmp.ne.s32.totalorder %s198, %s199
    %p211 = scmp.eq.s32.totalorder %s21, 1
    %p212 = por %p210, %p211
    %p214 = scmp.ne.s32.totalorder %s199, %s213
    %p215 = scmp.eq.s32.totalorder %s21, 0
    %p216 = por %p214, %p215
    %s217 = ssub.s32 %s15, %s22
    %p218 = scmp.eq.s32.totalorder %s217, 0
    %s220 = sadd.s32 %s219, 1
    %s221 = scalar_select %p218, %s219, %s220
    %p224 = pneg %p218
    %p225 = scmp.eq.s32.totalorder %s15, 1
    %p226 = por %p224, %p225
    %p227 = scmp.ne.s32.totalorder %s219, %s222
    %p228 = scmp.eq.s32.totalorder %s15, 0
    %p229 = por %p227, %p228
    %p230 = scmp.ne.s32.totalorder %s219, %s222
    %p231 = scmp.eq.s32.totalorder %s20, 1
    %p232 = por %p230, %p231
    %p233 = scmp.ne.s32.totalorder %s222, %s223
    %p234 = scmp.eq.s32.totalorder %s20, 0
    %p235 = por %p233, %p234
    %p236 = scmp.ne.s32.totalorder %s222, %s223
    %p237 = scmp.eq.s32.totalorder %s21, 1
    %p238 = por %p236, %p237
    %p240 = scmp.ne.s32.totalorder %s223, %s239
    %p241 = scmp.eq.s32.totalorder %s21, 0
    %p242 = por %p240, %p241
    %p243 = scmp.le.s32.totalorder 1, %s15
    %p244 = scmp.lt.s32.totalorder %s15, 3
    %p245 = pnand %p243, %p244
    %p246 = pneg %p245
    // Predicated region
    $region9: #{encoder_layer.5} parent=5 // pred_check
      _
    $region10: #{encoder_layer.5} parent=5 // pred_check_branch
      %248 = sbr.rel (%p245) target = $region12
    $region11: #{encoder_layer.5} parent=5 // pred_region
      %s249 = ssub.s32 %s15, 1
      // Predicated region
      $region13: #{encoder_layer.5} parent=11 // pred_check
        %p250 = pneg %p62
      $region14: #{encoder_layer.5} parent=11 // pred_check_branch
        %252 = sbr.rel (%p250) target = $region16
      $region15: #{encoder_layer.5} parent=11 // pred_region
        _
      $region16: #{encoder_layer.5} parent=11 // pred_fallthru
        _
      // Predicated region
      $region17: #{encoder_layer.5} parent=11 // pred_check
        %p253 = pneg %p83
      $region18: #{encoder_layer.5} parent=11 // pred_check_branch
        %255 = sbr.rel (%p253) target = $region20
      $region19: #{encoder_layer.5} parent=11 // pred_region
        _
      $region20: #{encoder_layer.5} parent=11 // pred_fallthru
        _
      // Predicated region
      $region21: #{encoder_layer.5} parent=11 // pred_check
        %p256 = pneg %p104
      $region22: #{encoder_layer.5} parent=11 // pred_check_branch
        %258 = sbr.rel (%p256) target = $region24
      $region23: #{encoder_layer.5} parent=11 // pred_region
        _
      $region24: #{encoder_layer.5} parent=11 // pred_fallthru
        _
      // Predicated region
      $region25: #{encoder_layer.5} parent=11 // pred_check
        %p259 = pneg %p125
      $region26: #{encoder_layer.5} parent=11 // pred_check_branch
        %261 = sbr.rel (%p259) target = $region28
      $region27: #{encoder_layer.5} parent=11 // pred_region
        _
      $region28: #{encoder_layer.5} parent=11 // pred_fallthru
        _
      // Predicated region
      $region29: #{encoder_layer.5} parent=11 // pred_check
        %p262 = pneg %p146
      $region30: #{encoder_layer.5} parent=11 // pred_check_branch
        %264 = sbr.rel (%p262) target = $region32
      $region31: #{encoder_layer.5} parent=11 // pred_region
        _
      $region32: #{encoder_layer.5} parent=11 // pred_fallthru
        _
      // Predicated region
      $region33: #{encoder_layer.5} parent=11 // pred_check
        %p265 = pneg %p167
      $region34: #{encoder_layer.5} parent=11 // pred_check_branch
        %267 = sbr.rel (%p265) target = $region36
      $region35: #{encoder_layer.5} parent=11 // pred_region
        _
      $region36: #{encoder_layer.5} parent=11 // pred_fallthru
        _
      // Predicated region
      $region37: #{encoder_layer.5} parent=11 // pred_check
        %p268 = pneg %p188
      $region38: #{encoder_layer.5} parent=11 // pred_check_branch
        %270 = sbr.rel (%p268) target = $region40
      $region39: #{encoder_layer.5} parent=11 // pred_region
        _
      $region40: #{encoder_layer.5} parent=11 // pred_fallthru
        _
      // Predicated region
      $region41: #{encoder_layer.5} parent=11 // pred_check
        %p271 = pneg %p209
      $region42: #{encoder_layer.5} parent=11 // pred_check_branch
        %273 = sbr.rel (%p271) target = $region44
      $region43: #{encoder_layer.5} parent=11 // pred_region
        _
      $region44: #{encoder_layer.5} parent=11 // pred_fallthru
        _
    $region12: #{encoder_layer.5} parent=5 // pred_fallthru
      _
    %p274 = scmp.lt.s32.totalorder %s15, 2
    // Predicated region
    $region45: #{encoder_layer.5} parent=5 // pred_check
      %p275 = pneg %p274
    $region46: #{encoder_layer.5} parent=5 // pred_check_branch
      %277 = sbr.rel (%p275) target = $region48
    $region47: #{encoder_layer.5} parent=5 // pred_region
      // Predicated region
      $region49: #{encoder_layer.5} parent=47 // pred_check
        %p278 = pneg %p35
      $region50: #{encoder_layer.5} parent=47 // pred_check_branch
        %280 = sbr.rel (%p278) target = $region52
      $region51: #{encoder_layer.5} parent=47 // pred_region
        %p281 = scmp.lt.s32.totalorder %s15, 1
        %s282 = scalar_select %p281, %s15, 1
        %s283 = smul.addr %s282, 8
        %s284 = smul.addr %s283, 8
        %s285 = scalar_lea.vmem %s0, %s284
      $region52: #{encoder_layer.5} parent=47 // pred_fallthru
        _
    $region48: #{encoder_layer.5} parent=5 // pred_fallthru
      _
    %p286 = scmp.le.s32.totalorder 1, %s15
    %p287 = scmp.lt.s32.totalorder %s15, 3
    %p288 = pnand %p286, %p287
    %p289 = pneg %p288
    // Predicated region
    $region53: #{encoder_layer.5} parent=5 // pred_check
      _
    $region54: #{encoder_layer.5} parent=5 // pred_check_branch
      %291 = sbr.rel (%p288) target = $region56
    $region55: #{encoder_layer.5} parent=5 // pred_region
      %s292 = ssub.s32 %s15, 1
      %p293 = scmp.lt.s32.totalorder %s20, 1
      %s294 = scalar_select %p293, %s20, 1
      %s295 = smul.addr %s294, 8
      %s296 = smul.addr %s295, 8
      %s297 = scalar_lea.vmem %s0, %s296
      %p298 = pneg %p41
      %p299 = pneg %p38
      %p300 = pneg %p62
      %p301 = pneg %p59
      %p302 = pneg %p83
      %p303 = pneg %p80
      %p304 = pneg %p104
      %p305 = pneg %p101
      %p306 = pneg %p125
      %p307 = pneg %p122
      %p308 = pneg %p146
      %p309 = pneg %p143
      %p310 = pneg %p167
      %p311 = pneg %p164
      %p312 = pneg %p188
      %p313 = pneg %p185
      %p314 = pneg %p209
      %p315 = pneg %p206
      %p316 = pneg %p235
      %p317 = pneg %p232
      %p318 = scmp.lt.s32.totalorder %s20, 1
      %s319 = scalar_select %p318, %s20, 1
      %s320 = smul.addr %s319, 8
      %s321 = smul.addr %s320, 8
      %s322 = scalar_lea.vmem %s9, %s321
      %p323 = scmp.lt.s32.totalorder %s20, 1
      %s324 = scalar_select %p323, %s20, 1
      %s325 = smul.addr %s324, 8
      %s326 = smul.addr %s325, 8
      %s327 = scalar_lea.vmem %s0, %s326
      %p328 = scmp.lt.s32.totalorder %s20, 1
      %s329 = scalar_select %p328, %s20, 1
      %s330 = smul.addr %s329, 8
      %s331 = smul.addr %s330, 8
      %s332 = scalar_lea.vmem %s9, %s331
      %v333 = vld [vmem:[%s327] sm:$0xff]
      %v334 = vld [vmem:[%s327 + $0x8] sm:$0xff]
      %v335 = vld [vmem:[%s327 + $0x10] sm:$0xff]
      %v336 = vld [vmem:[%s327 + $0x18] sm:$0xff]
      %v337 = vld [vmem:[%s327 + $0x20] sm:$0xff]
      %v338 = vld [vmem:[%s327 + $0x28] sm:$0xff]
      %v339 = vld [vmem:[%s327 + $0x30] sm:$0xff]
      %v340 = vld [vmem:[%s327 + $0x38] sm:$0xff]
      %v341 = vld [vmem:[%s3] sm:$0x1]
      %v342 = vld [vmem:[%s1] sm:$0x1]
      %v344 = vlaneseq
      %v345 = vshrl.u32 %v344, 7
      %v346 = vsub.s32 0, %v345
      %v347 = vrot.slane %v342, %v346
      %v349 = vsub.f32 %v333, %v347
      %v350 = vsub.f32 %v334, %v347
      %v351 = vsub.f32 %v335, %v347
      %v352 = vsub.f32 %v336, %v347
      %v353 = vsub.f32 %v337, %v347
      %v354 = vsub.f32 %v338, %v347
      %v355 = vsub.f32 %v339, %v347
      %v356 = vsub.f32 %v340, %v347
      %v358 = vlaneseq
      %v359 = vshrl.u32 %v358, 7
      %v360 = vsub.s32 0, %v359
      %v361 = vrot.slane %v341, %v360
      %v363 = vmul.f32 %v361, %v349
      %v364 = vmul.f32 %v361, %v350
      %v365 = vmul.f32 %v361, %v351
      %v366 = vmul.f32 %v361, %v352
      %v367 = vmul.f32 %v361, %v353
      %v368 = vmul.f32 %v361, %v354
      %v369 = vmul.f32 %v361, %v355
      %v370 = vmul.f32 %v361, %v356
      %v371 = vld [vmem:[%s2] sm:$0x1]
      %v373 = vlaneseq
      %v374 = vshrl.u32 %v373, 7
      %v375 = vsub.s32 0, %v374
      %v376 = vrot.slane %v371, %v375
      %v378 = vmul.f32 %v363, %v376
      %v379 = vmul.f32 %v364, %v376
      %v380 = vmul.f32 %v365, %v376
      %v381 = vmul.f32 %v366, %v376
      %v382 = vmul.f32 %v367, %v376
      %v383 = vmul.f32 %v368, %v376
      %v384 = vmul.f32 %v369, %v376
      %v385 = vmul.f32 %v370, %v376
      %v386 = vld [vmem:[%s4] sm:$0x1]
      %v388 = vlaneseq
      %v389 = vshrl.u32 %v388, 7
      %v390 = vsub.s32 0, %v389
      %v391 = vrot.slane %v386, %v390
      %v393 = vadd.f32 %v378, %v391
      %v394 = vadd.f32 %v379, %v391
      %v395 = vadd.f32 %v380, %v391
      %v396 = vadd.f32 %v381, %v391
      %v397 = vadd.f32 %v382, %v391
      %v398 = vadd.f32 %v383, %v391
      %v399 = vadd.f32 %v384, %v391
      %v400 = vadd.f32 %v385, %v391
      %v401 = vld [vmem:[%s5] sm:$0xff]
      %v402 = vld [vmem:[%s5 + $0x8] sm:$0xff]
      %v403 = vld [vmem:[%s5 + $0x10] sm:$0xff]
      %v404 = vld [vmem:[%s5 + $0x18] sm:$0xff]
      %v405 = vld [vmem:[%s6] sm:$0x1]
      %v407 = vlaneseq
      %v408 = vshrl.u32 %v407, 7
      %v409 = vsub.s32 0, %v408
      %v410 = vrot.slane %v405, %v409
      %vm412 = vcmask 261120
      %v414 = vsel %vm412, %v393, 0
      %v417 = vsel %vm412, %v394, 0
      %v420 = vsel %vm412, %v395, 0
      %v423 = vsel %vm412, %v396, 0
      %v426 = vsel %vm412, %v397, 0
      %v429 = vsel %vm412, %v398, 0
      %v432 = vsel %vm412, %v399, 0
      %v435 = vsel %vm412, %v400, 0
      %437 = vmatprep.subr.mxu0 0.0
      %438 = vmatpush1.msra.mxu0 0.0
      %439 = vmatprep.subr.mxu0 0.0
      %440 = vmatpush1.msra.mxu0 0.0
      %441 = vmatprep.subr.mxu0 0.0
      %442 = vmatpush1.msra.mxu0 0.0
      %443 = vmatprep.subr.mxu0 0.0
      %444 = vmatpush1.msra.mxu0 0.0
      %445 = vmatprep.subr.mxu0 0.0
      %446 = vmatpush1.msra.mxu0 0.0
      %447 = vmatprep.subr.mxu0 0.0
      %448 = vmatpush1.msra.mxu0 0.0
      %449 = vmatprep.subr.mxu0 0.0
      %450 = vmatpush1.msra.mxu0 0.0
      %451 = vmatprep.subr.mxu0 0.0
      %452 = vmatpush1.msra.mxu0 0.0
      %453 = vmatprep.subr.mxu0 0.0
      %454 = vmatpush1.msra.mxu0 0.0
      %455 = vmatprep.subr.mxu0 0.0
      %456 = vmatpush1.msra.mxu0 0.0
      %457 = vmatprep.subr.mxu0 0.0
      %458 = vmatpush1.msra.mxu0 0.0
      %459 = vmatprep.subr.mxu0 0.0
      %460 = vmatpush1.msra.mxu0 0.0
      %461 = vmatprep.subr.mxu0 0.0
      %462 = vmatpush1.msra.mxu0 %v404
      %463 = vmatprep.subr.mxu0 0.0
      %464 = vmatpush1.msra.mxu0 %v403
      %465 = vmatprep.subr.mxu0 0.0
      %466 = vmatpush1.msra.mxu0 %v402
      %467 = vmatprep.subr.mxu0 0.0
      %468 = vmatpush1.msra.mxu0 %v401
      %469 = vmatprep.subr.mxu0 0.0
      %470 = vmatpush2.msra.mxu0 0.0
      %471 = vmatprep.subr.mxu0 0.0
      %472 = vmatpush2.msra.mxu0 0.0
      %473 = vmatprep.subr.mxu0 0.0
      %474 = vmatpush2.msra.mxu0 0.0
      %475 = vmatprep.subr.mxu0 0.0
      %476 = vmatpush2.msra.mxu0 0.0
      %477 = vmatprep.subr.mxu0 0.0
      %478 = vmatpush2.msra.mxu0 0.0
      %479 = vmatprep.subr.mxu0 0.0
      %480 = vmatpush2.msra.mxu0 0.0
      %481 = vmatprep.subr.mxu0 0.0
      %482 = vmatpush2.msra.mxu0 0.0
      %483 = vmatprep.subr.mxu0 0.0
      %484 = vmatpush2.msra.mxu0 0.0
      %485 = vmatprep.subr.mxu0 0.0
      %486 = vmatpush2.msra.mxu0 0.0
      %487 = vmatprep.subr.mxu0 0.0
      %488 = vmatpush2.msra.mxu0 0.0
      %489 = vmatprep.subr.mxu0 0.0
      %490 = vmatpush2.msra.mxu0 0.0
      %491 = vmatprep.subr.mxu0 0.0
      %492 = vmatpush2.msra.mxu0 0.0
      %493 = vmatprep.subr.mxu0 0.0
      %494 = vmatpush2.msra.mxu0 0.0
      %495 = vmatprep.subr.mxu0 0.0
      %496 = vmatpush2.msra.mxu0 0.0
      %497 = vmatprep.subr.mxu0 0.0
      %498 = vmatpush2.msra.mxu0 0.0
      %499 = vmatprep.subr.mxu0 0.0
      %500 = vmatpush2.msra.mxu0 0.0
      %501 = vmatprep.mubr.f32.mxu0 0.0
      %502 = vmatmul.mubr.f32.gmra.mxu0 %v414
      %v503 = vpop.f32.mrf.mxu0
      %v504 = vadd.f32 %v410, %v503
      %v505 = vpop.f32.mrf.mxu0
      %506 = vmatprep.mubr.f32.mxu0 0.0
      %507 = vmatmul.mubr.f32.gmra.mxu0 %v417
      %v508 = vpop.f32.mrf.mxu0
      %v509 = vadd.f32 %v410, %v508
      %v510 = vpop.f32.mrf.mxu0
      %511 = vmatprep.mubr.f32.mxu0 0.0
      %512 = vmatmul.mubr.f32.gmra.mxu0 %v420
      %v513 = vpop.f32.mrf.mxu0
      %v514 = vadd.f32 %v410, %v513
      %v515 = vpop.f32.mrf.mxu0
      %516 = vmatprep.mubr.f32.mxu0 0.0
      %517 = vmatmul.mubr.f32.gmra.mxu0 %v423
      %v518 = vpop.f32.mrf.mxu0
      %v519 = vadd.f32 %v410, %v518
      %v520 = vpop.f32.mrf.mxu0
      %521 = vmatprep.mubr.f32.mxu0 0.0
      %522 = vmatmul.mubr.f32.gmra.mxu0 %v426
      %v523 = vpop.f32.mrf.mxu0
      %v524 = vadd.f32 %v410, %v523
      %v525 = vpop.f32.mrf.mxu0
      %526 = vmatprep.mubr.f32.mxu0 0.0
      %527 = vmatmul.mubr.f32.gmra.mxu0 %v429
      %v528 = vpop.f32.mrf.mxu0
      %v529 = vadd.f32 %v410, %v528
      %v530 = vpop.f32.mrf.mxu0
      %531 = vmatprep.mubr.f32.mxu0 0.0
      %532 = vmatmul.mubr.f32.gmra.mxu0 %v432
      %v533 = vpop.f32.mrf.mxu0
      %v534 = vadd.f32 %v410, %v533
      %v535 = vpop.f32.mrf.mxu0
      %536 = vmatprep.mubr.f32.mxu0 0.0
      %537 = vmatmul.mubr.f32.gmra.mxu0 %v435
      %v538 = vpop.f32.mrf.mxu0
      %v539 = vadd.f32 %v410, %v538
      %v540 = vpop.f32.mrf.mxu0
      %541 = vdwg.mxu0
      %v542 = vmul.f32 %v504, 0.17677669
      %v543 = vmul.f32 %v509, 0.17677669
      %v544 = vmul.f32 %v514, 0.17677669
      %v545 = vmul.f32 %v519, 0.17677669
      %v546 = vmul.f32 %v524, 0.17677669
      %v547 = vmul.f32 %v529, 0.17677669
      %v548 = vmul.f32 %v534, 0.17677669
      %v549 = vmul.f32 %v539, 0.17677669
      %558 = vrot.lane.b32.xlu0 %v504, 96
      %v559 = vpop.permute.xlu0 %558
      %560 = vrot.lane.b32.xlu0 %v509, 96
      %v561 = vpop.permute.xlu0 %560
      %562 = vrot.lane.b32.xlu0 %v514, 96
      %v563 = vpop.permute.xlu0 %562
      %564 = vrot.lane.b32.xlu0 %v519, 96
      %v565 = vpop.permute.xlu0 %564
      %566 = vrot.lane.b32.xlu0 %v524, 96
      %v567 = vpop.permute.xlu0 %566
      %568 = vrot.lane.b32.xlu0 %v529, 96
      %v569 = vpop.permute.xlu0 %568
      %570 = vrot.lane.b32.xlu0 %v534, 96
      %v571 = vpop.permute.xlu0 %570
      %572 = vrot.lane.b32.xlu0 %v539, 96
      %v573 = vpop.permute.xlu0 %572
      %v575 = vsel %vm412, %v542, 0
      %v578 = vsel %vm412, %v543, 0
      %v581 = vsel %vm412, %v544, 0
      %v584 = vsel %vm412, %v545, 0
      %v587 = vsel %vm412, %v546, 0
      %v590 = vsel %vm412, %v547, 0
      %v593 = vsel %vm412, %v548, 0
      %v596 = vsel %vm412, %v549, 0
      %v598 = vsel %vm412, %v559, 0
      %v600 = vsel %vm412, %v561, 0
      %v602 = vsel %vm412, %v563, 0
      %v604 = vsel %vm412, %v565, 0
      %v606 = vsel %vm412, %v567, 0
      %v608 = vsel %vm412, %v569, 0
      %v610 = vsel %vm412, %v571, 0
      %v612 = vsel %vm412, %v573, 0
      %614 = vmatprep.subr.mxu0 0.0
      %615 = vmatpush1.xpose.msra.mxu0 0.0
      %616 = vmatprep.subr.mxu0 0.0
      %617 = vmatpush1.xpose.msra.mxu0 0.0
      %618 = vmatprep.subr.mxu0 0.0
      %619 = vmatpush1.xpose.msra.mxu0 0.0
      %620 = vmatprep.subr.mxu0 0.0
      %621 = vmatpush1.xpose.msra.mxu0 0.0
      %622 = vmatprep.subr.mxu0 0.0
      %623 = vmatpush1.xpose.msra.mxu0 0.0
      %624 = vmatprep.subr.mxu0 0.0
      %625 = vmatpush1.xpose.msra.mxu0 0.0
      %626 = vmatprep.subr.mxu0 0.0
      %627 = vmatpush1.xpose.msra.mxu0 0.0
      %628 = vmatprep.subr.mxu0 0.0
      %629 = vmatpush1.xpose.msra.mxu0 0.0
      %630 = vmatprep.subr.mxu0 0.0
      %631 = vmatpush1.xpose.msra.mxu0 %v612
      %632 = vmatprep.subr.mxu0 0.0
      %633 = vmatpush1.xpose.msra.mxu0 %v610
      %634 = vmatprep.subr.mxu0 0.0
      %635 = vmatpush1.xpose.msra.mxu0 %v608
      %636 = vmatprep.subr.mxu0 0.0
      %637 = vmatpush1.xpose.msra.mxu0 %v606
      %638 = vmatprep.subr.mxu0 0.0
      %639 = vmatpush1.xpose.msra.mxu0 %v604
      %640 = vmatprep.subr.mxu0 0.0
      %641 = vmatpush1.xpose.msra.mxu0 %v602
      %642 = vmatprep.subr.mxu0 0.0
      %643 = vmatpush1.xpose.msra.mxu0 %v600
      %644 = vmatprep.subr.mxu0 0.0
      %645 = vmatpush1.xpose.msra.mxu0 %v598
      %646 = vmatprep.subr.mxu0 0.0
      %647 = vmatpush2.xpose.msra.mxu0 0.0
      %648 = vmatprep.subr.mxu0 0.0
      %649 = vmatpush2.xpose.msra.mxu0 0.0
      %650 = vmatprep.subr.mxu0 0.0
      %651 = vmatpush2.xpose.msra.mxu0 0.0
      %652 = vmatprep.subr.mxu0 0.0
      %653 = vmatpush2.xpose.msra.mxu0 0.0
      %654 = vmatprep.subr.mxu0 0.0
      %655 = vmatpush2.xpose.msra.mxu0 0.0
      %656 = vmatprep.subr.mxu0 0.0
      %657 = vmatpush2.xpose.msra.mxu0 0.0
      %658 = vmatprep.subr.mxu0 0.0
      %659 = vmatpush2.xpose.msra.mxu0 0.0
      %660 = vmatprep.subr.mxu0 0.0
      %661 = vmatpush2.xpose.msra.mxu0 0.0
      %662 = vmatprep.subr.mxu0 0.0
      %663 = vmatpush2.xpose.msra.mxu0 0.0
      %664 = vmatprep.subr.mxu0 0.0
      %665 = vmatpush2.xpose.msra.mxu0 0.0
      %666 = vmatprep.subr.mxu0 0.0
      %667 = vmatpush2.xpose.msra.mxu0 0.0
      %668 = vmatprep.subr.mxu0 0.0
      %669 = vmatpush2.xpose.msra.mxu0 0.0
      %670 = vmatprep.subr.mxu0 0.0
      %671 = vmatpush2.xpose.msra.mxu0 0.0
      %672 = vmatprep.subr.mxu0 0.0
      %673 = vmatpush2.xpose.msra.mxu0 0.0
      %674 = vmatprep.subr.mxu0 0.0
      %675 = vmatpush2.xpose.msra.mxu0 0.0
      %676 = vmatprep.subr.mxu0 0.0
      %677 = vmatpush2.xpose.msra.mxu0 0.0
      %678 = vmatprep.mubr.f32.mxu0 0.0
      %679 = vmatmul.mubr.f32.gmra.mxu0 %v575
      %v680 = vpop.f32.mrf.mxu0
      %v681 = vadd.f32 0.0, %v680
      %v682 = vpop.f32.mrf.mxu0
      %683 = vmatprep.mubr.f32.mxu0 0.0
      %684 = vmatmul.mubr.f32.gmra.mxu0 %v578
      %v685 = vpop.f32.mrf.mxu0
      %v686 = vadd.f32 0.0, %v685
      %v687 = vpop.f32.mrf.mxu0
      %688 = vmatprep.mubr.f32.mxu0 0.0
      %689 = vmatmul.mubr.f32.gmra.mxu0 %v581
      %v690 = vpop.f32.mrf.mxu0
      %v691 = vadd.f32 0.0, %v690
      %v692 = vpop.f32.mrf.mxu0
      %693 = vmatprep.mubr.f32.mxu0 0.0
      %694 = vmatmul.mubr.f32.gmra.mxu0 %v584
      %v695 = vpop.f32.mrf.mxu0
      %v696 = vadd.f32 0.0, %v695
      %v697 = vpop.f32.mrf.mxu0
      %698 = vmatprep.mubr.f32.mxu0 0.0
      %699 = vmatmul.mubr.f32.gmra.mxu0 %v587
      %v700 = vpop.f32.mrf.mxu0
      %v701 = vadd.f32 0.0, %v700
      %v702 = vpop.f32.mrf.mxu0
      %703 = vmatprep.mubr.f32.mxu0 0.0
      %704 = vmatmul.mubr.f32.gmra.mxu0 %v590
      %v705 = vpop.f32.mrf.mxu0
      %v706 = vadd.f32 0.0, %v705
      %v707 = vpop.f32.mrf.mxu0
      %708 = vmatprep.mubr.f32.mxu0 0.0
      %709 = vmatmul.mubr.f32.gmra.mxu0 %v593
      %v710 = vpop.f32.mrf.mxu0
      %v711 = vadd.f32 0.0, %v710
      %v712 = vpop.f32.mrf.mxu0
      %713 = vmatprep.mubr.f32.mxu0 0.0
      %714 = vmatmul.mubr.f32.gmra.mxu0 %v596
      %v715 = vpop.f32.mrf.mxu0
      %v716 = vadd.f32 0.0, %v715
      %v717 = vpop.f32.mrf.mxu0
      %718 = vdwg.mxu0
      %vm719 = vcmask 523264
      %v720 = vsel %vm719, %v681, -inf
      %721 = vmax.xlane.f32.xlu0 %v720
      %v722 = vpop.xlane.xlu0 %721
      %v723 = vsel %vm719, %v686, -inf
      %724 = vmax.xlane.f32.xlu0 %v723
      %v725 = vpop.xlane.xlu0 %724
      %v726 = vsel %vm719, %v691, -inf
      %727 = vmax.xlane.f32.xlu0 %v726
      %v728 = vpop.xlane.xlu0 %727
      %v729 = vsel %vm719, %v696, -inf
      %730 = vmax.xlane.f32.xlu0 %v729
      %v731 = vpop.xlane.xlu0 %730
      %v732 = vsel %vm719, %v701, -inf
      %733 = vmax.xlane.f32.xlu0 %v732
      %v734 = vpop.xlane.xlu0 %733
      %v735 = vsel %vm719, %v706, -inf
      %736 = vmax.xlane.f32.xlu0 %v735
      %v737 = vpop.xlane.xlu0 %736
      %v738 = vsel %vm719, %v711, -inf
      %739 = vmax.xlane.f32.xlu0 %v738
      %v740 = vpop.xlane.xlu0 %739
      %v741 = vsel %vm719, %v716, -inf
      %742 = vmax.xlane.f32.xlu0 %v741
      %v743 = vpop.xlane.xlu0 %742
      %v744 = vsub.f32 %v681, %v722
      %v745 = vsub.f32 %v686, %v725
      %v746 = vsub.f32 %v691, %v728
      %v747 = vsub.f32 %v696, %v731
      %v748 = vsub.f32 %v701, %v734
      %v749 = vsub.f32 %v706, %v737
      %v750 = vsub.f32 %v711, %v740
      %v751 = vsub.f32 %v716, %v743
      %v752 = vmul.f32 %v744, 1.442695
      %v753 = vpow.pop %v752
      %v754 = vmul.f32 %v745, 1.442695
      %v755 = vpow.pop %v754
      %v756 = vmul.f32 %v746, 1.442695
      %v757 = vpow.pop %v756
      %v758 = vmul.f32 %v747, 1.442695
      %v759 = vpow.pop %v758
      %v760 = vmul.f32 %v748, 1.442695
      %v761 = vpow.pop %v760
      %v762 = vmul.f32 %v749, 1.442695
      %v763 = vpow.pop %v762
      %v764 = vmul.f32 %v750, 1.442695
      %v765 = vpow.pop %v764
      %v766 = vmul.f32 %v751, 1.442695
      %v767 = vpow.pop %v766
      %v768 = vsel %vm719, %v753, 0.0
      %769 = vadd.xlane.f32.xlu0 %v768
      %v770 = vpop.xlane.xlu0 %769
      %v771 = vsel %vm719, %v755, 0.0
      %772 = vadd.xlane.f32.xlu0 %v771
      %v773 = vpop.xlane.xlu0 %772
      %v774 = vsel %vm719, %v757, 0.0
      %775 = vadd.xlane.f32.xlu0 %v774
      %v776 = vpop.xlane.xlu0 %775
      %v777 = vsel %vm719, %v759, 0.0
      %778 = vadd.xlane.f32.xlu0 %v777
      %v779 = vpop.xlane.xlu0 %778
      %v780 = vsel %vm719, %v761, 0.0
      %781 = vadd.xlane.f32.xlu0 %v780
      %v782 = vpop.xlane.xlu0 %781
      %v783 = vsel %vm719, %v763, 0.0
      %784 = vadd.xlane.f32.xlu0 %v783
      %v785 = vpop.xlane.xlu0 %784
      %v786 = vsel %vm719, %v765, 0.0
      %787 = vadd.xlane.f32.xlu0 %v786
      %v788 = vpop.xlane.xlu0 %787
      %v789 = vsel %vm719, %v767, 0.0
      %790 = vadd.xlane.f32.xlu0 %v789
      %v791 = vpop.xlane.xlu0 %790
      %792 = vrot.lane.b32.xlu0 %v504, 64
      %v793 = vpop.permute.xlu0 %792
      %794 = vrot.lane.b32.xlu0 %v509, 64
      %v795 = vpop.permute.xlu0 %794
      %796 = vrot.lane.b32.xlu0 %v514, 64
      %v797 = vpop.permute.xlu0 %796
      %798 = vrot.lane.b32.xlu0 %v519, 64
      %v799 = vpop.permute.xlu0 %798
      %800 = vrot.lane.b32.xlu0 %v524, 64
      %v801 = vpop.permute.xlu0 %800
      %802 = vrot.lane.b32.xlu0 %v529, 64
      %v803 = vpop.permute.xlu0 %802
      %804 = vrot.lane.b32.xlu0 %v534, 64
      %v805 = vpop.permute.xlu0 %804
      %806 = vrot.lane.b32.xlu0 %v539, 64
      %v807 = vpop.permute.xlu0 %806
      %v817 = vsel %vm719, %v753, 0
      %v820 = vsel %vm719, %v755, 0
      %v823 = vsel %vm719, %v757, 0
      %v826 = vsel %vm719, %v759, 0
      %v829 = vsel %vm719, %v761, 0
      %v832 = vsel %vm719, %v763, 0
      %v835 = vsel %vm719, %v765, 0
      %v838 = vsel %vm719, %v767, 0
      %840 = vmatprep.subr.mxu0 0.0
      %841 = vmatpush1.msra.mxu0 0.0
      %842 = vmatprep.subr.mxu0 0.0
      %843 = vmatpush1.msra.mxu0 0.0
      %844 = vmatprep.subr.mxu0 0.0
      %845 = vmatpush1.msra.mxu0 0.0
      %846 = vmatprep.subr.mxu0 0.0
      %847 = vmatpush1.msra.mxu0 0.0
      %848 = vmatprep.subr.mxu0 0.0
      %849 = vmatpush1.msra.mxu0 0.0
      %850 = vmatprep.subr.mxu0 0.0
      %851 = vmatpush1.msra.mxu0 0.0
      %852 = vmatprep.subr.mxu0 0.0
      %853 = vmatpush1.msra.mxu0 0.0
      %854 = vmatprep.subr.mxu0 0.0
      %855 = vmatpush1.msra.mxu0 0.0
      %856 = vmatprep.subr.mxu0 0.0
      %857 = vmatpush1.msra.mxu0 %v807
      %858 = vmatprep.subr.mxu0 0.0
      %859 = vmatpush1.msra.mxu0 %v805
      %860 = vmatprep.subr.mxu0 0.0
      %861 = vmatpush1.msra.mxu0 %v803
      %862 = vmatprep.subr.mxu0 0.0
      %863 = vmatpush1.msra.mxu0 %v801
      %864 = vmatprep.subr.mxu0 0.0
      %865 = vmatpush1.msra.mxu0 %v799
      %866 = vmatprep.subr.mxu0 0.0
      %867 = vmatpush1.msra.mxu0 %v797
      %868 = vmatprep.subr.mxu0 0.0
      %869 = vmatpush1.msra.mxu0 %v795
      %870 = vmatprep.subr.mxu0 0.0
      %871 = vmatpush1.msra.mxu0 %v793
      %872 = vmatprep.subr.mxu0 0.0
      %873 = vmatpush2.msra.mxu0 0.0
      %874 = vmatprep.subr.mxu0 0.0
      %875 = vmatpush2.msra.mxu0 0.0
      %876 = vmatprep.subr.mxu0 0.0
      %877 = vmatpush2.msra.mxu0 0.0
      %878 = vmatprep.subr.mxu0 0.0
      %879 = vmatpush2.msra.mxu0 0.0
      %880 = vmatprep.subr.mxu0 0.0
      %881 = vmatpush2.msra.mxu0 0.0
      %882 = vmatprep.subr.mxu0 0.0
      %883 = vmatpush2.msra.mxu0 0.0
      %884 = vmatprep.subr.mxu0 0.0
      %885 = vmatpush2.msra.mxu0 0.0
      %886 = vmatprep.subr.mxu0 0.0
      %887 = vmatpush2.msra.mxu0 0.0
      %888 = vmatprep.subr.mxu0 0.0
      %889 = vmatpush2.msra.mxu0 0.0
      %890 = vmatprep.subr.mxu0 0.0
      %891 = vmatpush2.msra.mxu0 0.0
      %892 = vmatprep.subr.mxu0 0.0
      %893 = vmatpush2.msra.mxu0 0.0
      %894 = vmatprep.subr.mxu0 0.0
      %895 = vmatpush2.msra.mxu0 0.0
      %896 = vmatprep.subr.mxu0 0.0
      %897 = vmatpush2.msra.mxu0 0.0
      %898 = vmatprep.subr.mxu0 0.0
      %899 = vmatpush2.msra.mxu0 0.0
      %900 = vmatprep.subr.mxu0 0.0
      %901 = vmatpush2.msra.mxu0 0.0
      %902 = vmatprep.subr.mxu0 0.0
      %903 = vmatpush2.msra.mxu0 0.0
      %904 = vmatprep.mubr.f32.mxu0 0.0
      %905 = vmatmul.mubr.f32.gmra.mxu0 %v817
      %v906 = vpop.f32.mrf.mxu0
      %v907 = vadd.f32 0.0, %v906
      %v908 = vpop.f32.mrf.mxu0
      %909 = vmatprep.mubr.f32.mxu0 0.0
      %910 = vmatmul.mubr.f32.gmra.mxu0 %v820
      %v911 = vpop.f32.mrf.mxu0
      %v912 = vadd.f32 0.0, %v911
      %v913 = vpop.f32.mrf.mxu0
      %914 = vmatprep.mubr.f32.mxu0 0.0
      %915 = vmatmul.mubr.f32.gmra.mxu0 %v823
      %v916 = vpop.f32.mrf.mxu0
      %v917 = vadd.f32 0.0, %v916
      %v918 = vpop.f32.mrf.mxu0
      %919 = vmatprep.mubr.f32.mxu0 0.0
      %920 = vmatmul.mubr.f32.gmra.mxu0 %v826
      %v921 = vpop.f32.mrf.mxu0
      %v922 = vadd.f32 0.0, %v921
      %v923 = vpop.f32.mrf.mxu0
      %924 = vmatprep.mubr.f32.mxu0 0.0
      %925 = vmatmul.mubr.f32.gmra.mxu0 %v829
      %v926 = vpop.f32.mrf.mxu0
      %v927 = vadd.f32 0.0, %v926
      %v928 = vpop.f32.mrf.mxu0
      %929 = vmatprep.mubr.f32.mxu0 0.0
      %930 = vmatmul.mubr.f32.gmra.mxu0 %v832
      %v931 = vpop.f32.mrf.mxu0
      %v932 = vadd.f32 0.0, %v931
      %v933 = vpop.f32.mrf.mxu0
      %934 = vmatprep.mubr.f32.mxu0 0.0
      %935 = vmatmul.mubr.f32.gmra.mxu0 %v835
      %v936 = vpop.f32.mrf.mxu0
      %v937 = vadd.f32 0.0, %v936
      %v938 = vpop.f32.mrf.mxu0
      %939 = vmatprep.mubr.f32.mxu0 0.0
      %940 = vmatmul.mubr.f32.gmra.mxu0 %v838
      %v941 = vpop.f32.mrf.mxu0
      %v942 = vadd.f32 0.0, %v941
      %v943 = vpop.f32.mrf.mxu0
      %944 = vdwg.mxu0
      %v945 = vrcp.pop %v770
      %v946 = vrcp.pop %v773
      %v947 = vrcp.pop %v776
      %v948 = vrcp.pop %v779
      %v949 = vrcp.pop %v782
      %v950 = vrcp.pop %v785
      %v951 = vrcp.pop %v788
      %v952 = vrcp.pop %v791
      %v953 = vmul.f32 %v907, %v945
      %v954 = vmul.f32 %v912, %v946
      %v955 = vmul.f32 %v917, %v947
      %v956 = vmul.f32 %v922, %v948
      %v957 = vmul.f32 %v927, %v949
      %v958 = vmul.f32 %v932, %v950
      %v959 = vmul.f32 %v937, %v951
      %v960 = vmul.f32 %v942, %v952
      %v961 = vld [vmem:[%s7] sm:$0xff]
      %v962 = vld [vmem:[%s7 + $0x8] sm:$0xff]
      %v963 = vld [vmem:[%s7 + $0x10] sm:$0xff]
      %v964 = vld [vmem:[%s7 + $0x18] sm:$0xff]
      %v965 = vld [vmem:[%s8] sm:$0x1]
      %v967 = vlaneseq
      %v968 = vshrl.u32 %v967, 7
      %v969 = vsub.s32 0, %v968
      %v970 = vrot.slane %v965, %v969
      %v973 = vsel %vm412, %v953, 0
      %v976 = vsel %vm412, %v954, 0
      %v979 = vsel %vm412, %v955, 0
      %v982 = vsel %vm412, %v956, 0
      %v985 = vsel %vm412, %v957, 0
      %v988 = vsel %vm412, %v958, 0
      %v991 = vsel %vm412, %v959, 0
      %v994 = vsel %vm412, %v960, 0
      %996 = vmatprep.subr.mxu0 0.0
      %997 = vmatpush1.msra.mxu0 0.0
      %998 = vmatprep.subr.mxu0 0.0
      %999 = vmatpush1.msra.mxu0 0.0
      %1000 = vmatprep.subr.mxu0 0.0
      %1001 = vmatpush1.msra.mxu0 0.0
      %1002 = vmatprep.subr.mxu0 0.0
      %1003 = vmatpush1.msra.mxu0 0.0
      %1004 = vmatprep.subr.mxu0 0.0
      %1005 = vmatpush1.msra.mxu0 0.0
      %1006 = vmatprep.subr.mxu0 0.0
      %1007 = vmatpush1.msra.mxu0 0.0
      %1008 = vmatprep.subr.mxu0 0.0
      %1009 = vmatpush1.msra.mxu0 0.0
      %1010 = vmatprep.subr.mxu0 0.0
      %1011 = vmatpush1.msra.mxu0 0.0
      %1012 = vmatprep.subr.mxu0 0.0
      %1013 = vmatpush1.msra.mxu0 0.0
      %1014 = vmatprep.subr.mxu0 0.0
      %1015 = vmatpush1.msra.mxu0 0.0
      %1016 = vmatprep.subr.mxu0 0.0
      %1017 = vmatpush1.msra.mxu0 0.0
      %1018 = vmatprep.subr.mxu0 0.0
      %1019 = vmatpush1.msra.mxu0 0.0
      %1020 = vmatprep.subr.mxu0 0.0
      %1021 = vmatpush1.msra.mxu0 %v964
      %1022 = vmatprep.subr.mxu0 0.0
      %1023 = vmatpush1.msra.mxu0 %v963
      %1024 = vmatprep.subr.mxu0 0.0
      %1025 = vmatpush1.msra.mxu0 %v962
      %1026 = vmatprep.subr.mxu0 0.0
      %1027 = vmatpush1.msra.mxu0 %v961
      %1028 = vmatprep.subr.mxu0 0.0
      %1029 = vmatpush2.msra.mxu0 0.0
      %1030 = vmatprep.subr.mxu0 0.0
      %1031 = vmatpush2.msra.mxu0 0.0
      %1032 = vmatprep.subr.mxu0 0.0
      %1033 = vmatpush2.msra.mxu0 0.0
      %1034 = vmatprep.subr.mxu0 0.0
      %1035 = vmatpush2.msra.mxu0 0.0
      %1036 = vmatprep.subr.mxu0 0.0
      %1037 = vmatpush2.msra.mxu0 0.0
      %1038 = vmatprep.subr.mxu0 0.0
      %1039 = vmatpush2.msra.mxu0 0.0
      %1040 = vmatprep.subr.mxu0 0.0
      %1041 = vmatpush2.msra.mxu0 0.0
      %1042 = vmatprep.subr.mxu0 0.0
      %1043 = vmatpush2.msra.mxu0 0.0
      %1044 = vmatprep.subr.mxu0 0.0
      %1045 = vmatpush2.msra.mxu0 0.0
      %1046 = vmatprep.subr.mxu0 0.0
      %1047 = vmatpush2.msra.mxu0 0.0
      %1048 = vmatprep.subr.mxu0 0.0
      %1049 = vmatpush2.msra.mxu0 0.0
      %1050 = vmatprep.subr.mxu0 0.0
      %1051 = vmatpush2.msra.mxu0 0.0
      %1052 = vmatprep.subr.mxu0 0.0
      %1053 = vmatpush2.msra.mxu0 0.0
      %1054 = vmatprep.subr.mxu0 0.0
      %1055 = vmatpush2.msra.mxu0 0.0
      %1056 = vmatprep.subr.mxu0 0.0
      %1057 = vmatpush2.msra.mxu0 0.0
      %1058 = vmatprep.subr.mxu0 0.0
      %1059 = vmatpush2.msra.mxu0 0.0
      %1060 = vmatprep.mubr.f32.mxu0 0.0
      %1061 = vmatmul.mubr.f32.gmra.mxu0 %v973
      %v1062 = vpop.f32.mrf.mxu0
      %v1063 = vadd.f32 %v970, %v1062
      %v1064 = vpop.f32.mrf.mxu0
      %1065 = vmatprep.mubr.f32.mxu0 0.0
      %1066 = vmatmul.mubr.f32.gmra.mxu0 %v976
      %v1067 = vpop.f32.mrf.mxu0
      %v1068 = vadd.f32 %v970, %v1067
      %v1069 = vpop.f32.mrf.mxu0
      %1070 = vmatprep.mubr.f32.mxu0 0.0
      %1071 = vmatmul.mubr.f32.gmra.mxu0 %v979
      %v1072 = vpop.f32.mrf.mxu0
      %v1073 = vadd.f32 %v970, %v1072
      %v1074 = vpop.f32.mrf.mxu0
      %1075 = vmatprep.mubr.f32.mxu0 0.0
      %1076 = vmatmul.mubr.f32.gmra.mxu0 %v982
      %v1077 = vpop.f32.mrf.mxu0
      %v1078 = vadd.f32 %v970, %v1077
      %v1079 = vpop.f32.mrf.mxu0
      %1080 = vmatprep.mubr.f32.mxu0 0.0
      %1081 = vmatmul.mubr.f32.gmra.mxu0 %v985
      %v1082 = vpop.f32.mrf.mxu0
      %v1083 = vadd.f32 %v970, %v1082
      %v1084 = vpop.f32.mrf.mxu0
      %1085 = vmatprep.mubr.f32.mxu0 0.0
      %1086 = vmatmul.mubr.f32.gmra.mxu0 %v988
      %v1087 = vpop.f32.mrf.mxu0
      %v1088 = vadd.f32 %v970, %v1087
      %v1089 = vpop.f32.mrf.mxu0
      %1090 = vmatprep.mubr.f32.mxu0 0.0
      %1091 = vmatmul.mubr.f32.gmra.mxu0 %v991
      %v1092 = vpop.f32.mrf.mxu0
      %v1093 = vadd.f32 %v970, %v1092
      %v1094 = vpop.f32.mrf.mxu0
      %1095 = vmatprep.mubr.f32.mxu0 0.0
      %1096 = vmatmul.mubr.f32.gmra.mxu0 %v994
      %v1097 = vpop.f32.mrf.mxu0
      %v1098 = vadd.f32 %v970, %v1097
      %v1099 = vpop.f32.mrf.mxu0
      %1100 = vdwg.mxu0
      %v1101 = vadd.f32 %v333, %v1063
      %v1102 = vadd.f32 %v334, %v1068
      %v1103 = vadd.f32 %v335, %v1073
      %v1104 = vadd.f32 %v336, %v1078
      %v1105 = vadd.f32 %v337, %v1083
      %v1106 = vadd.f32 %v338, %v1088
      %v1107 = vadd.f32 %v339, %v1093
      %v1108 = vadd.f32 %v340, %v1098
      %1109 = vst.msk [vmem:[%s332] sm:$0xff] %vm412, %v1101
      %1110 = vst.msk [vmem:[%s332 + $0x8] sm:$0xff] %vm412, %v1102
      %1111 = vst.msk [vmem:[%s332 + $0x10] sm:$0xff] %vm412, %v1103
      %1112 = vst.msk [vmem:[%s332 + $0x18] sm:$0xff] %vm412, %v1104
      %1113 = vst.msk [vmem:[%s332 + $0x20] sm:$0xff] %vm412, %v1105
      %1114 = vst.msk [vmem:[%s332 + $0x28] sm:$0xff] %vm412, %v1106
      %1115 = vst.msk [vmem:[%s332 + $0x30] sm:$0xff] %vm412, %v1107
      %1116 = vst.msk [vmem:[%s332 + $0x38] sm:$0xff] %vm412, %v1108
      %p1117 = scmp.lt.s32.totalorder %s20, 1
      %s1118 = scalar_select %p1117, %s20, 1
      %s1119 = smul.addr %s1118, 8
      %s1120 = smul.addr %s1119, 8
      %s1121 = scalar_lea.vmem %s9, %s1120
      // Predicated region
      $region57: #{encoder_layer.5} parent=55 // pred_check
        %p1122 = pneg %p232
      $region58: #{encoder_layer.5} parent=55 // pred_check_branch
        %1124 = sbr.rel (%p1122) target = $region60
      $region59: #{encoder_layer.5} parent=55 // pred_region
        _
      $region60: #{encoder_layer.5} parent=55 // pred_fallthru
        _
    $region56: #{encoder_layer.5} parent=5 // pred_fallthru
      _
    %p1125 = scmp.le.s32.totalorder 2, %s15
    // Predicated region
    $region61: #{encoder_layer.5} parent=5 // pred_check
      %p1126 = pneg %p1125
    $region62: #{encoder_layer.5} parent=5 // pred_check_branch
      %1128 = sbr.rel (%p1126) target = $region64
    $region63: #{encoder_layer.5} parent=5 // pred_region
      %s1129 = ssub.s32 %s15, 2
      // Predicated region
      $region65: #{encoder_layer.5} parent=63 // pred_check
        %p1130 = pneg %p238
      $region66: #{encoder_layer.5} parent=63 // pred_check_branch
        %1132 = sbr.rel (%p1130) target = $region68
      $region67: #{encoder_layer.5} parent=63 // pred_region
        %p1133 = scmp.lt.s32.totalorder %s21, 1
        %s1134 = scalar_select %p1133, %s21, 1
        %s1135 = smul.addr %s1134, 8
        %s1136 = smul.addr %s1135, 8
        %s1137 = scalar_lea.vmem %s9, %s1136
      $region68: #{encoder_layer.5} parent=63 // pred_fallthru
        _
    $region64: #{encoder_layer.5} parent=5 // pred_fallthru
      _
  $region6: #{encoder_layer.5} parent=0 // loop_footer
    %s19 = sadd.s32 1, %s15
  $region7: #{encoder_layer.5} parent=0 // loop_footer_branch
    %14 = sbr.rel target = $region3
  $region8: #{encoder_layer.5} parent=0 // loop_exit
    _

</llo_original>
